<compile_context>
chip_gen: v6e
topology: v6e:2x2x1
jax: 0.10.0
libtpu: 0.0.40
codegen_flags: <defaults>
</compile_context>

<pallas_src>
import jax
import jax.numpy as jnp
from jax.experimental import pallas as pl
from jax.experimental.pallas import tpu as pltpu


def _round_up(x, m):
    return (x + m - 1) // m * m


# ------------------------------ fused kernel --------------------------------


def _encoder_fused_kernel(tok_ref, emb_hbm, w_ref, b_ref, h_ref, hout_ref,
                          x_vmem, sem):
    """One grid step = one GRU layer. Layer 0 also gathers the embeddings.

    tok_ref : (bszp,) int32 in SMEM (scalar prefetch)
    emb_hbm : (vocab, Hp) f32/bf16 in HBM (pl.ANY)
    w_ref   : (1, 2*Hp, 4*Hp) fused weights for this layer
    b_ref   : (1, 1, 4*Hp)   fused biases  for this layer
    h_ref   : (1, bszp, Hp)  hidden in,  hout_ref: (1, bszp, Hp) hidden out
    x_vmem  : (bszp, Hp) f32 scratch — running activation across layers
    sem     : (bszp,) DMA semaphores for the row gather
    """
    layer = pl.program_id(0)
    bszp, Hp = x_vmem.shape

    @pl.when(layer == 0)
    def _gather_embeddings():
        # Row gather straight from HBM: only bszp * Hp elements move.
        for i in range(bszp):
            pltpu.make_async_copy(emb_hbm.at[tok_ref[i]], x_vmem.at[i],
                                  sem.at[i]).start()
        for i in range(bszp):
            pltpu.make_async_copy(emb_hbm.at[tok_ref[i]], x_vmem.at[i],
                                  sem.at[i]).wait()
        # Embedding dropout = identity (eval mode).

    x = x_vmem[...]                                   # (bszp, Hp) f32
    h = h_ref[0]                                      # (bszp, Hp) f32
    xh = jnp.concatenate([x, h], axis=-1)             # (bszp, 2*Hp), lane-aligned

    # Single MXU push; gate layout [r | z | i_n | h_n], each a 128-lane slab.
    gates = jnp.dot(xh.astype(w_ref.dtype), w_ref[0],
                    preferred_element_type=jnp.float32) + b_ref[0]
    r = jax.nn.sigmoid(gates[:, 0 * Hp:1 * Hp])
    z = jax.nn.sigmoid(gates[:, 1 * Hp:2 * Hp])
    n = jnp.tanh(gates[:, 2 * Hp:3 * Hp] + r * gates[:, 3 * Hp:4 * Hp])
    h_new = (1.0 - z) * n + z * h

    hout_ref[0] = h_new
    x_vmem[...] = h_new     # input to the next layer (inter-layer dropout = identity, eval)


# ------------------------------ forward wrapper ------------------------------


@jax.jit
def encoder_rnn_forward(tokens, hidden, emb_p, w_fused, b_fused):
    """Matches EncoderRNN.forward(input, hidden) in eval mode.

    tokens: (bsz,) int, hidden: (nlayers, bsz, H).
    Returns (output, hidden_new): output (1, bsz, H), hidden_new (nlayers, bsz, H).
    """
    nlayers, bsz, H = hidden.shape
    vocab, Hp = emb_p.shape
    bszp = _round_up(max(bsz, 1), 8)

    # Pad to lane/sublane-aligned kernel-facing layout (layout plumbing only).
    tok_p = jnp.zeros((bszp,), jnp.int32).at[:bsz].set(tokens.astype(jnp.int32))
    hid_p = jnp.zeros((nlayers, bszp, Hp), jnp.float32).at[:, :bsz, :H].set(
        hidden.astype(jnp.float32))

    grid_spec = pltpu.PrefetchScalarGridSpec(
        num_scalar_prefetch=1,                 # token ids -> SMEM, drive the DMA gather
        grid=(nlayers,),
        in_specs=[
            pl.BlockSpec(memory_space=pl.ANY),                             # embedding table (HBM)
            pl.BlockSpec((1, 2 * Hp, 4 * Hp), lambda l, tok: (l, 0, 0)),   # fused weights / layer
            pl.BlockSpec((1, 1, 4 * Hp), lambda l, tok: (l, 0, 0)),        # fused biases / layer
            pl.BlockSpec((1, bszp, Hp), lambda l, tok: (l, 0, 0)),         # hidden in / layer
        ],
        out_specs=pl.BlockSpec((1, bszp, Hp), lambda l, tok: (l, 0, 0)),   # hidden out / layer
        scratch_shapes=[
            pltpu.VMEM((bszp, Hp), jnp.float32),      # running activation x (layer carry)
            pltpu.SemaphoreType.DMA((bszp,)),         # one sem per gathered row
        ],
    )

    # Explicit VMEM budget (weights are double-buffered by the pipeline);
    # stays far below v7x's 64 MiB physical / 32 MiB default scoped VMEM.
    elt = 4
    vmem_need = elt * (2 * (2 * Hp * 4 * Hp + 4 * Hp)      # weights + biases (x2 buffers)
                       + 4 * bszp * Hp                      # hidden in/out (x2 buffers)
                       + bszp * Hp)                         # scratch
    cost = pl.CostEstimate(
        flops=2 * nlayers * bszp * (2 * Hp) * (4 * Hp),
        transcendentals=3 * nlayers * bszp * Hp,
        bytes_accessed=elt * (bszp * Hp
                              + nlayers * (2 * Hp * 4 * Hp + 4 * Hp + 2 * bszp * Hp)),
    )

    new_hid_p = pl.pallas_call(
        _encoder_fused_kernel,
        out_shape=jax.ShapeDtypeStruct((nlayers, bszp, Hp), jnp.float32),
        grid_spec=grid_spec,
        compiler_params=pltpu.CompilerParams(
            dimension_semantics=("arbitrary",),       # layers are sequential (x carry)
            vmem_limit_bytes=int(2 * vmem_need) + (1 << 20),
        ),
        cost_estimate=cost,
    )(tok_p, emb_p, w_fused, b_fused, hid_p)

    new_hidden = new_hid_p[:, :bsz, :H]
    output = new_hidden[-1][None]                     # (1, bsz, H); output dropout = identity
    return output, new_hidden


# ------------------------- params (PyTorch layout) ---------------------------


def init_params(key, input_size, hidden_size, nlayers=1):
    """Deterministic init mirroring PyTorch parameter shapes (GRU input == hidden)."""
    H = hidden_size
    keys = jax.random.split(key, 1 + 4 * nlayers)
    params = {"embedding": jax.random.normal(keys[0], (input_size, H), jnp.float32)}
    bound = 1.0 / float(H) ** 0.5
    for l in range(nlayers):
        k0, k1, k2, k3 = keys[1 + 4 * l: 5 + 4 * l]
        params[f"weight_ih_l{l}"] = jax.random.uniform(k0, (3 * H, H), jnp.float32, -bound, bound)
        params[f"weight_hh_l{l}"] = jax.random.uniform(k1, (3 * H, H), jnp.float32, -bound, bound)
        params[f"bias_ih_l{l}"] = jax.random.uniform(k2, (3 * H,), jnp.float32, -bound, bound)
        params[f"bias_hh_l{l}"] = jax.random.uniform(k3, (3 * H,), jnp.float32, -bound, bound)
    return params


def pack_params(params, nlayers, hidden_size, dtype=jnp.float32):
    """Pack PyTorch-layout params into the lane-aligned, gate-slab kernel layout.

    Weight layout per layer (2*Hp, 4*Hp), gate columns [r | z | i_n | h_n]:
      rows [0:H]    <- W_i*^T (x side),   rows [Hp:Hp+H] <- W_h*^T (h side);
      the n gate keeps its x / h contributions in separate column slabs.
    Bias layout (1, 4*Hp): [b_ir+b_hr | b_iz+b_hz | b_in | b_hn].
    """
    H = hidden_size
    Hp = _round_up(max(H, 1), 128)
    vocab = params["embedding"].shape[0]
    emb_p = jnp.zeros((vocab, Hp), dtype).at[:, :H].set(params["embedding"].astype(dtype))

    w_all, b_all = [], []
    for l in range(nlayers):
        wih = params[f"weight_ih_l{l}"]        # (3H, H)
        whh = params[f"weight_hh_l{l}"]        # (3H, H)
        bih = params[f"bias_ih_l{l}"]          # (3H,)
        bhh = params[f"bias_hh_l{l}"]          # (3H,)

        wf = jnp.zeros((2 * Hp, 4 * Hp), dtype)
        wf = wf.at[0:H,       0 * Hp:0 * Hp + H].set(wih[0:H].T.astype(dtype))        # r, x
        wf = wf.at[Hp:Hp + H, 0 * Hp:0 * Hp + H].set(whh[0:H].T.astype(dtype))        # r, h
        wf = wf.at[0:H,       1 * Hp:1 * Hp + H].set(wih[H:2 * H].T.astype(dtype))    # z, x
        wf = wf.at[Hp:Hp + H, 1 * Hp:1 * Hp + H].set(whh[H:2 * H].T.astype(dtype))    # z, h
        wf = wf.at[0:H,       2 * Hp:2 * Hp + H].set(wih[2 * H:3 * H].T.astype(dtype))  # i_n
        wf = wf.at[Hp:Hp + H, 3 * Hp:3 * Hp + H].set(whh[2 * H:3 * H].T.astype(dtype))  # h_n

        bf = jnp.zeros((1, 4 * Hp), jnp.float32)
        bf = bf.at[0, 0 * Hp:0 * Hp + H].set(bih[0:H] + bhh[0:H])            # r (pre-summed)
        bf = bf.at[0, 1 * Hp:1 * Hp + H].set(bih[H:2 * H] + bhh[H:2 * H])    # z (pre-summed)
        bf = bf.at[0, 2 * Hp:2 * Hp + H].set(bih[2 * H:3 * H])               # i_n
        bf = bf.at[0, 3 * Hp:3 * Hp + H].set(bhh[2 * H:3 * H])               # h_n
        w_all.append(wf)
        b_all.append(bf)

    return {"emb": emb_p,
            "w": jnp.stack(w_all),             # (nlayers, 2*Hp, 4*Hp)
            "b": jnp.stack(b_all)}             # (nlayers, 1, 4*Hp)


# ----------------------------- pure-JAX reference ----------------------------


def reference_forward(tokens, hidden, params):
    x = params["embedding"][tokens]
    H = x.shape[-1]
    nlayers = hidden.shape[0]
    new_hidden = []
    for l in range(nlayers):
        h = hidden[l]
        gi = x @ params[f"weight_ih_l{l}"].T + params[f"bias_ih_l{l}"]
        gh = h @ params[f"weight_hh_l{l}"].T + params[f"bias_hh_l{l}"]
        r = jax.nn.sigmoid(gi[:, :H] + gh[:, :H])
        z = jax.nn.sigmoid(gi[:, H:2 * H] + gh[:, H:2 * H])
        n = jnp.tanh(gi[:, 2 * H:] + r * gh[:, 2 * H:])
        h_new = (1.0 - z) * n + z * h
        new_hidden.append(h_new)
        x = h_new
    return x[None], jnp.stack(new_hidden, axis=0)


# ----------------------------------- main ------------------------------------

if __name__ == "__main__":
    INPUT_SIZE = 100      # vocab
    HIDDEN = 32
    NLAYERS = 2
    BSZ = 2

    key = jax.random.PRNGKey(0)
    pkey, ikey = jax.random.split(key)
    params = init_params(pkey, INPUT_SIZE, HIDDEN, NLAYERS)
    packed = pack_params(params, NLAYERS, HIDDEN)     # dtype=jnp.bfloat16 for v6e/v7x weights

    tokens = jax.random.randint(ikey, (BSZ,), 0, INPUT_SIZE, dtype=jnp.int32)
    hidden0 = jnp.zeros((NLAYERS, BSZ, HIDDEN), jnp.float32)   # EncoderRNN.initHidden

    out, hid = encoder_rnn_forward(tokens, hidden0, packed["emb"], packed["w"], packed["b"])
    out = jax.block_until_ready(out)
    hid = jax.block_until_ready(hid)

    ref_out, ref_hid = reference_forward(tokens, hidden0, params)
    assert out.shape == (1, BSZ, HIDDEN) and hid.shape == (NLAYERS, BSZ, HIDDEN)
    assert jnp.allclose(out, ref_out, atol=1e-5, rtol=1e-5), \
        float(jnp.max(jnp.abs(out - ref_out)))
    assert jnp.allclose(hid, ref_hid, atol=1e-5, rtol=1e-5), \
        float(jnp.max(jnp.abs(hid - ref_hid)))

    print("KERNEL_OK")
</pallas_src>

<mosaic_0001>
module attributes {stable_mosaic.version = 11 : i64} {
  func.func @_encoder_fused_kernel(%arg0: i32, %arg1: memref<8xi32, #tpu.memory_space<smem>>, %arg2: memref<100x128xf32, #tpu.memory_space<any>>, %arg3: memref<1x256x512xf32, #tpu.memory_space<vmem>>, %arg4: memref<1x1x512xf32, #tpu.memory_space<vmem>>, %arg5: memref<1x8x128xf32, #tpu.memory_space<vmem>>, %arg6: memref<1x8x128xf32, #tpu.memory_space<vmem>>, %arg7: memref<8x128xf32, #tpu.memory_space<vmem>>, %arg8: memref<8x!tpu.dma_semaphore, #tpu.memory_space<semaphore_mem>>) attributes {dimension_semantics = [#tpu.dimension_semantics<arbitrary>], iteration_bounds = array<i64: 2>, scalar_prefetch = 1 : i64, scratch_operands = 2 : i64, tpu.core_type = #tpu.core_type<tc>, window_params = [{}, {transform_indices = @transform_1, window_bounds = array<i64: 1, 256, 512>}, {transform_indices = @transform_2, window_bounds = array<i64: 1, 1, 512>}, {transform_indices = @transform_3, window_bounds = array<i64: 1, 8, 128>}, {transform_indices = @transform_4, window_bounds = array<i64: 1, 8, 128>}]} {
    %c0_i32 = arith.constant 0 : i32
    %0 = arith.cmpi eq, %arg0, %c0_i32 : i32
    %1 = arith.extui %0 : i1 to i32
    %c0_i32_0 = arith.constant 0 : i32
    %2 = arith.cmpi ne, %1, %c0_i32_0 : i32
    scf.if %2 {
      %c0_19 = arith.constant 0 : index
      %40 = memref.load %arg1[%c0_19] : memref<8xi32, #tpu.memory_space<smem>>
      %c0_i32_20 = arith.constant 0 : i32
      %c0_i32_21 = arith.constant 0 : i32
      %c0_i32_22 = arith.constant 0 : i32
      %41 = tpu.memref_slice %arg2[%40, %c0_i32_22] : memref<100x128xf32, #tpu.memory_space<any>> -> memref<1x128xf32, #tpu.memory_space<any>>
      %42 = tpu.memref_squeeze %41 : memref<1x128xf32, #tpu.memory_space<any>> -> memref<128xf32, #tpu.memory_space<any>>
      %c0_i32_23 = arith.constant 0 : i32
      %43 = tpu.memref_slice %arg7[%c0_i32_20, %c0_i32_23] : memref<8x128xf32, #tpu.memory_space<vmem>> -> memref<1x128xf32, #tpu.memory_space<vmem>>
      %44 = tpu.memref_squeeze %43 : memref<1x128xf32, #tpu.memory_space<vmem>> -> memref<128xf32, #tpu.memory_space<vmem>>
      %45 = tpu.memref_slice %arg8[%c0_i32_21] : memref<8x!tpu.dma_semaphore, #tpu.memory_space<semaphore_mem>> -> memref<1x!tpu.dma_semaphore, #tpu.memory_space<semaphore_mem>>
      %46 = tpu.memref_squeeze %45 : memref<1x!tpu.dma_semaphore, #tpu.memory_space<semaphore_mem>> -> memref<!tpu.dma_semaphore, #tpu.memory_space<semaphore_mem>>
      tpu.enqueue_dma source(%42 : memref<128xf32, #tpu.memory_space<any>>) target(%44 : memref<128xf32, #tpu.memory_space<vmem>>) target_semaphore(%46 : memref<!tpu.dma_semaphore, #tpu.memory_space<semaphore_mem>>)
      %c1 = arith.constant 1 : index
      %47 = memref.load %arg1[%c1] : memref<8xi32, #tpu.memory_space<smem>>
      %c1_i32 = arith.constant 1 : i32
      %c1_i32_24 = arith.constant 1 : i32
      %c0_i32_25 = arith.constant 0 : i32
      %48 = tpu.memref_slice %arg2[%47, %c0_i32_25] : memref<100x128xf32, #tpu.memory_space<any>> -> memref<1x128xf32, #tpu.memory_space<any>>
      %49 = tpu.memref_squeeze %48 : memref<1x128xf32, #tpu.memory_space<any>> -> memref<128xf32, #tpu.memory_space<any>>
      %c0_i32_26 = arith.constant 0 : i32
      %50 = tpu.memref_slice %arg7[%c1_i32, %c0_i32_26] : memref<8x128xf32, #tpu.memory_space<vmem>> -> memref<1x128xf32, #tpu.memory_space<vmem>>
      %51 = tpu.memref_squeeze %50 : memref<1x128xf32, #tpu.memory_space<vmem>> -> memref<128xf32, #tpu.memory_space<vmem>>
      %52 = tpu.memref_slice %arg8[%c1_i32_24] : memref<8x!tpu.dma_semaphore, #tpu.memory_space<semaphore_mem>> -> memref<1x!tpu.dma_semaphore, #tpu.memory_space<semaphore_mem>>
      %53 = tpu.memref_squeeze %52 : memref<1x!tpu.dma_semaphore, #tpu.memory_space<semaphore_mem>> -> memref<!tpu.dma_semaphore, #tpu.memory_space<semaphore_mem>>
      tpu.enqueue_dma source(%49 : memref<128xf32, #tpu.memory_space<any>>) target(%51 : memref<128xf32, #tpu.memory_space<vmem>>) target_semaphore(%53 : memref<!tpu.dma_semaphore, #tpu.memory_space<semaphore_mem>>)
      %c2 = arith.constant 2 : index
      %54 = memref.load %arg1[%c2] : memref<8xi32, #tpu.memory_space<smem>>
      %c2_i32 = arith.constant 2 : i32
      %c2_i32_27 = arith.constant 2 : i32
      %c0_i32_28 = arith.constant 0 : i32
      %55 = tpu.memref_slice %arg2[%54, %c0_i32_28] : memref<100x128xf32, #tpu.memory_space<any>> -> memref<1x128xf32, #tpu.memory_space<any>>
      %56 = tpu.memref_squeeze %55 : memref<1x128xf32, #tpu.memory_space<any>> -> memref<128xf32, #tpu.memory_space<any>>
      %c0_i32_29 = arith.constant 0 : i32
      %57 = tpu.memref_slice %arg7[%c2_i32, %c0_i32_29] : memref<8x128xf32, #tpu.memory_space<vmem>> -> memref<1x128xf32, #tpu.memory_space<vmem>>
      %58 = tpu.memref_squeeze %57 : memref<1x128xf32, #tpu.memory_space<vmem>> -> memref<128xf32, #tpu.memory_space<vmem>>
      %59 = tpu.memref_slice %arg8[%c2_i32_27] : memref<8x!tpu.dma_semaphore, #tpu.memory_space<semaphore_mem>> -> memref<1x!tpu.dma_semaphore, #tpu.memory_space<semaphore_mem>>
      %60 = tpu.memref_squeeze %59 : memref<1x!tpu.dma_semaphore, #tpu.memory_space<semaphore_mem>> -> memref<!tpu.dma_semaphore, #tpu.memory_space<semaphore_mem>>
      tpu.enqueue_dma source(%56 : memref<128xf32, #tpu.memory_space<any>>) target(%58 : memref<128xf32, #tpu.memory_space<vmem>>) target_semaphore(%60 : memref<!tpu.dma_semaphore, #tpu.memory_space<semaphore_mem>>)
      %c3 = arith.constant 3 : index
      %61 = memref.load %arg1[%c3] : memref<8xi32, #tpu.memory_space<smem>>
      %c3_i32 = arith.constant 3 : i32
      %c3_i32_30 = arith.constant 3 : i32
      %c0_i32_31 = arith.constant 0 : i32
      %62 = tpu.memref_slice %arg2[%61, %c0_i32_31] : memref<100x128xf32, #tpu.memory_space<any>> -> memref<1x128xf32, #tpu.memory_space<any>>
      %63 = tpu.memref_squeeze %62 : memref<1x128xf32, #tpu.memory_space<any>> -> memref<128xf32, #tpu.memory_space<any>>
      %c0_i32_32 = arith.constant 0 : i32
      %64 = tpu.memref_slice %arg7[%c3_i32, %c0_i32_32] : memref<8x128xf32, #tpu.memory_space<vmem>> -> memref<1x128xf32, #tpu.memory_space<vmem>>
      %65 = tpu.memref_squeeze %64 : memref<1x128xf32, #tpu.memory_space<vmem>> -> memref<128xf32, #tpu.memory_space<vmem>>
      %66 = tpu.memref_slice %arg8[%c3_i32_30] : memref<8x!tpu.dma_semaphore, #tpu.memory_space<semaphore_mem>> -> memref<1x!tpu.dma_semaphore, #tpu.memory_space<semaphore_mem>>
      %67 = tpu.memref_squeeze %66 : memref<1x!tpu.dma_semaphore, #tpu.memory_space<semaphore_mem>> -> memref<!tpu.dma_semaphore, #tpu.memory_space<semaphore_mem>>
      tpu.enqueue_dma source(%63 : memref<128xf32, #tpu.memory_space<any>>) target(%65 : memref<128xf32, #tpu.memory_space<vmem>>) target_semaphore(%67 : memref<!tpu.dma_semaphore, #tpu.memory_space<semaphore_mem>>)
      %c4 = arith.constant 4 : index
      %68 = memref.load %arg1[%c4] : memref<8xi32, #tpu.memory_space<smem>>
      %c4_i32 = arith.constant 4 : i32
      %c4_i32_33 = arith.constant 4 : i32
      %c0_i32_34 = arith.constant 0 : i32
      %69 = tpu.memref_slice %arg2[%68, %c0_i32_34] : memref<100x128xf32, #tpu.memory_space<any>> -> memref<1x128xf32, #tpu.memory_space<any>>
      %70 = tpu.memref_squeeze %69 : memref<1x128xf32, #tpu.memory_space<any>> -> memref<128xf32, #tpu.memory_space<any>>
      %c0_i32_35 = arith.constant 0 : i32
      %71 = tpu.memref_slice %arg7[%c4_i32, %c0_i32_35] : memref<8x128xf32, #tpu.memory_space<vmem>> -> memref<1x128xf32, #tpu.memory_space<vmem>>
      %72 = tpu.memref_squeeze %71 : memref<1x128xf32, #tpu.memory_space<vmem>> -> memref<128xf32, #tpu.memory_space<vmem>>
      %73 = tpu.memref_slice %arg8[%c4_i32_33] : memref<8x!tpu.dma_semaphore, #tpu.memory_space<semaphore_mem>> -> memref<1x!tpu.dma_semaphore, #tpu.memory_space<semaphore_mem>>
      %74 = tpu.memref_squeeze %73 : memref<1x!tpu.dma_semaphore, #tpu.memory_space<semaphore_mem>> -> memref<!tpu.dma_semaphore, #tpu.memory_space<semaphore_mem>>
      tpu.enqueue_dma source(%70 : memref<128xf32, #tpu.memory_space<any>>) target(%72 : memref<128xf32, #tpu.memory_space<vmem>>) target_semaphore(%74 : memref<!tpu.dma_semaphore, #tpu.memory_space<semaphore_mem>>)
      %c5 = arith.constant 5 : index
      %75 = memref.load %arg1[%c5] : memref<8xi32, #tpu.memory_space<smem>>
      %c5_i32 = arith.constant 5 : i32
      %c5_i32_36 = arith.constant 5 : i32
      %c0_i32_37 = arith.constant 0 : i32
      %76 = tpu.memref_slice %arg2[%75, %c0_i32_37] : memref<100x128xf32, #tpu.memory_space<any>> -> memref<1x128xf32, #tpu.memory_space<any>>
      %77 = tpu.memref_squeeze %76 : memref<1x128xf32, #tpu.memory_space<any>> -> memref<128xf32, #tpu.memory_space<any>>
      %c0_i32_38 = arith.constant 0 : i32
      %78 = tpu.memref_slice %arg7[%c5_i32, %c0_i32_38] : memref<8x128xf32, #tpu.memory_space<vmem>> -> memref<1x128xf32, #tpu.memory_space<vmem>>
      %79 = tpu.memref_squeeze %78 : memref<1x128xf32, #tpu.memory_space<vmem>> -> memref<128xf32, #tpu.memory_space<vmem>>
      %80 = tpu.memref_slice %arg8[%c5_i32_36] : memref<8x!tpu.dma_semaphore, #tpu.memory_space<semaphore_mem>> -> memref<1x!tpu.dma_semaphore, #tpu.memory_space<semaphore_mem>>
      %81 = tpu.memref_squeeze %80 : memref<1x!tpu.dma_semaphore, #tpu.memory_space<semaphore_mem>> -> memref<!tpu.dma_semaphore, #tpu.memory_space<semaphore_mem>>
      tpu.enqueue_dma source(%77 : memref<128xf32, #tpu.memory_space<any>>) target(%79 : memref<128xf32, #tpu.memory_space<vmem>>) target_semaphore(%81 : memref<!tpu.dma_semaphore, #tpu.memory_space<semaphore_mem>>)
      %c6 = arith.constant 6 : index
      %82 = memref.load %arg1[%c6] : memref<8xi32, #tpu.memory_space<smem>>
      %c6_i32 = arith.constant 6 : i32
      %c6_i32_39 = arith.constant 6 : i32
      %c0_i32_40 = arith.constant 0 : i32
      %83 = tpu.memref_slice %arg2[%82, %c0_i32_40] : memref<100x128xf32, #tpu.memory_space<any>> -> memref<1x128xf32, #tpu.memory_space<any>>
      %84 = tpu.memref_squeeze %83 : memref<1x128xf32, #tpu.memory_space<any>> -> memref<128xf32, #tpu.memory_space<any>>
      %c0_i32_41 = arith.constant 0 : i32
      %85 = tpu.memref_slice %arg7[%c6_i32, %c0_i32_41] : memref<8x128xf32, #tpu.memory_space<vmem>> -> memref<1x128xf32, #tpu.memory_space<vmem>>
      %86 = tpu.memref_squeeze %85 : memref<1x128xf32, #tpu.memory_space<vmem>> -> memref<128xf32, #tpu.memory_space<vmem>>
      %87 = tpu.memref_slice %arg8[%c6_i32_39] : memref<8x!tpu.dma_semaphore, #tpu.memory_space<semaphore_mem>> -> memref<1x!tpu.dma_semaphore, #tpu.memory_space<semaphore_mem>>
      %88 = tpu.memref_squeeze %87 : memref<1x!tpu.dma_semaphore, #tpu.memory_space<semaphore_mem>> -> memref<!tpu.dma_semaphore, #tpu.memory_space<semaphore_mem>>
      tpu.enqueue_dma source(%84 : memref<128xf32, #tpu.memory_space<any>>) target(%86 : memref<128xf32, #tpu.memory_space<vmem>>) target_semaphore(%88 : memref<!tpu.dma_semaphore, #tpu.memory_space<semaphore_mem>>)
      %c7 = arith.constant 7 : index
      %89 = memref.load %arg1[%c7] : memref<8xi32, #tpu.memory_space<smem>>
      %c7_i32 = arith.constant 7 : i32
      %c7_i32_42 = arith.constant 7 : i32
      %c0_i32_43 = arith.constant 0 : i32
      %90 = tpu.memref_slice %arg2[%89, %c0_i32_43] : memref<100x128xf32, #tpu.memory_space<any>> -> memref<1x128xf32, #tpu.memory_space<any>>
      %91 = tpu.memref_squeeze %90 : memref<1x128xf32, #tpu.memory_space<any>> -> memref<128xf32, #tpu.memory_space<any>>
      %c0_i32_44 = arith.constant 0 : i32
      %92 = tpu.memref_slice %arg7[%c7_i32, %c0_i32_44] : memref<8x128xf32, #tpu.memory_space<vmem>> -> memref<1x128xf32, #tpu.memory_space<vmem>>
      %93 = tpu.memref_squeeze %92 : memref<1x128xf32, #tpu.memory_space<vmem>> -> memref<128xf32, #tpu.memory_space<vmem>>
      %94 = tpu.memref_slice %arg8[%c7_i32_42] : memref<8x!tpu.dma_semaphore, #tpu.memory_space<semaphore_mem>> -> memref<1x!tpu.dma_semaphore, #tpu.memory_space<semaphore_mem>>
      %95 = tpu.memref_squeeze %94 : memref<1x!tpu.dma_semaphore, #tpu.memory_space<semaphore_mem>> -> memref<!tpu.dma_semaphore, #tpu.memory_space<semaphore_mem>>
      tpu.enqueue_dma source(%91 : memref<128xf32, #tpu.memory_space<any>>) target(%93 : memref<128xf32, #tpu.memory_space<vmem>>) target_semaphore(%95 : memref<!tpu.dma_semaphore, #tpu.memory_space<semaphore_mem>>)
      %c0_45 = arith.constant 0 : index
      %96 = memref.load %arg1[%c0_45] : memref<8xi32, #tpu.memory_space<smem>>
      %c0_i32_46 = arith.constant 0 : i32
      %c0_i32_47 = arith.constant 0 : i32
      %c0_i32_48 = arith.constant 0 : i32
      %97 = tpu.memref_slice %arg2[%96, %c0_i32_48] : memref<100x128xf32, #tpu.memory_space<any>> -> memref<1x128xf32, #tpu.memory_space<any>>
      %98 = tpu.memref_squeeze %97 : memref<1x128xf32, #tpu.memory_space<any>> -> memref<128xf32, #tpu.memory_space<any>>
      %c0_i32_49 = arith.constant 0 : i32
      %99 = tpu.memref_slice %arg7[%c0_i32_46, %c0_i32_49] : memref<8x128xf32, #tpu.memory_space<vmem>> -> memref<1x128xf32, #tpu.memory_space<vmem>>
      %100 = tpu.memref_squeeze %99 : memref<1x128xf32, #tpu.memory_space<vmem>> -> memref<128xf32, #tpu.memory_space<vmem>>
      %101 = tpu.memref_slice %arg8[%c0_i32_47] : memref<8x!tpu.dma_semaphore, #tpu.memory_space<semaphore_mem>> -> memref<1x!tpu.dma_semaphore, #tpu.memory_space<semaphore_mem>>
      %102 = tpu.memref_squeeze %101 : memref<1x!tpu.dma_semaphore, #tpu.memory_space<semaphore_mem>> -> memref<!tpu.dma_semaphore, #tpu.memory_space<semaphore_mem>>
      tpu.wait_dma2 semaphore(%102 : memref<!tpu.dma_semaphore, #tpu.memory_space<semaphore_mem>>) src(%98 : memref<128xf32, #tpu.memory_space<any>>) dst(%100 : memref<128xf32, #tpu.memory_space<vmem>>)
      %c1_50 = arith.constant 1 : index
      %103 = memref.load %arg1[%c1_50] : memref<8xi32, #tpu.memory_space<smem>>
      %c1_i32_51 = arith.constant 1 : i32
      %c1_i32_52 = arith.constant 1 : i32
      %c0_i32_53 = arith.constant 0 : i32
      %104 = tpu.memref_slice %arg2[%103, %c0_i32_53] : memref<100x128xf32, #tpu.memory_space<any>> -> memref<1x128xf32, #tpu.memory_space<any>>
      %105 = tpu.memref_squeeze %104 : memref<1x128xf32, #tpu.memory_space<any>> -> memref<128xf32, #tpu.memory_space<any>>
      %c0_i32_54 = arith.constant 0 : i32
      %106 = tpu.memref_slice %arg7[%c1_i32_51, %c0_i32_54] : memref<8x128xf32, #tpu.memory_space<vmem>> -> memref<1x128xf32, #tpu.memory_space<vmem>>
      %107 = tpu.memref_squeeze %106 : memref<1x128xf32, #tpu.memory_space<vmem>> -> memref<128xf32, #tpu.memory_space<vmem>>
      %108 = tpu.memref_slice %arg8[%c1_i32_52] : memref<8x!tpu.dma_semaphore, #tpu.memory_space<semaphore_mem>> -> memref<1x!tpu.dma_semaphore, #tpu.memory_space<semaphore_mem>>
      %109 = tpu.memref_squeeze %108 : memref<1x!tpu.dma_semaphore, #tpu.memory_space<semaphore_mem>> -> memref<!tpu.dma_semaphore, #tpu.memory_space<semaphore_mem>>
      tpu.wait_dma2 semaphore(%109 : memref<!tpu.dma_semaphore, #tpu.memory_space<semaphore_mem>>) src(%105 : memref<128xf32, #tpu.memory_space<any>>) dst(%107 : memref<128xf32, #tpu.memory_space<vmem>>)
      %c2_55 = arith.constant 2 : index
      %110 = memref.load %arg1[%c2_55] : memref<8xi32, #tpu.memory_space<smem>>
      %c2_i32_56 = arith.constant 2 : i32
      %c2_i32_57 = arith.constant 2 : i32
      %c0_i32_58 = arith.constant 0 : i32
      %111 = tpu.memref_slice %arg2[%110, %c0_i32_58] : memref<100x128xf32, #tpu.memory_space<any>> -> memref<1x128xf32, #tpu.memory_space<any>>
      %112 = tpu.memref_squeeze %111 : memref<1x128xf32, #tpu.memory_space<any>> -> memref<128xf32, #tpu.memory_space<any>>
      %c0_i32_59 = arith.constant 0 : i32
      %113 = tpu.memref_slice %arg7[%c2_i32_56, %c0_i32_59] : memref<8x128xf32, #tpu.memory_space<vmem>> -> memref<1x128xf32, #tpu.memory_space<vmem>>
      %114 = tpu.memref_squeeze %113 : memref<1x128xf32, #tpu.memory_space<vmem>> -> memref<128xf32, #tpu.memory_space<vmem>>
      %115 = tpu.memref_slice %arg8[%c2_i32_57] : memref<8x!tpu.dma_semaphore, #tpu.memory_space<semaphore_mem>> -> memref<1x!tpu.dma_semaphore, #tpu.memory_space<semaphore_mem>>
      %116 = tpu.memref_squeeze %115 : memref<1x!tpu.dma_semaphore, #tpu.memory_space<semaphore_mem>> -> memref<!tpu.dma_semaphore, #tpu.memory_space<semaphore_mem>>
      tpu.wait_dma2 semaphore(%116 : memref<!tpu.dma_semaphore, #tpu.memory_space<semaphore_mem>>) src(%112 : memref<128xf32, #tpu.memory_space<any>>) dst(%114 : memref<128xf32, #tpu.memory_space<vmem>>)
      %c3_60 = arith.constant 3 : index
      %117 = memref.load %arg1[%c3_60] : memref<8xi32, #tpu.memory_space<smem>>
      %c3_i32_61 = arith.constant 3 : i32
      %c3_i32_62 = arith.constant 3 : i32
      %c0_i32_63 = arith.constant 0 : i32
      %118 = tpu.memref_slice %arg2[%117, %c0_i32_63] : memref<100x128xf32, #tpu.memory_space<any>> -> memref<1x128xf32, #tpu.memory_space<any>>
      %119 = tpu.memref_squeeze %118 : memref<1x128xf32, #tpu.memory_space<any>> -> memref<128xf32, #tpu.memory_space<any>>
      %c0_i32_64 = arith.constant 0 : i32
      %120 = tpu.memref_slice %arg7[%c3_i32_61, %c0_i32_64] : memref<8x128xf32, #tpu.memory_space<vmem>> -> memref<1x128xf32, #tpu.memory_space<vmem>>
      %121 = tpu.memref_squeeze %120 : memref<1x128xf32, #tpu.memory_space<vmem>> -> memref<128xf32, #tpu.memory_space<vmem>>
      %122 = tpu.memref_slice %arg8[%c3_i32_62] : memref<8x!tpu.dma_semaphore, #tpu.memory_space<semaphore_mem>> -> memref<1x!tpu.dma_semaphore, #tpu.memory_space<semaphore_mem>>
      %123 = tpu.memref_squeeze %122 : memref<1x!tpu.dma_semaphore, #tpu.memory_space<semaphore_mem>> -> memref<!tpu.dma_semaphore, #tpu.memory_space<semaphore_mem>>
      tpu.wait_dma2 semaphore(%123 : memref<!tpu.dma_semaphore, #tpu.memory_space<semaphore_mem>>) src(%119 : memref<128xf32, #tpu.memory_space<any>>) dst(%121 : memref<128xf32, #tpu.memory_space<vmem>>)
      %c4_65 = arith.constant 4 : index
      %124 = memref.load %arg1[%c4_65] : memref<8xi32, #tpu.memory_space<smem>>
      %c4_i32_66 = arith.constant 4 : i32
      %c4_i32_67 = arith.constant 4 : i32
      %c0_i32_68 = arith.constant 0 : i32
      %125 = tpu.memref_slice %arg2[%124, %c0_i32_68] : memref<100x128xf32, #tpu.memory_space<any>> -> memref<1x128xf32, #tpu.memory_space<any>>
      %126 = tpu.memref_squeeze %125 : memref<1x128xf32, #tpu.memory_space<any>> -> memref<128xf32, #tpu.memory_space<any>>
      %c0_i32_69 = arith.constant 0 : i32
      %127 = tpu.memref_slice %arg7[%c4_i32_66, %c0_i32_69] : memref<8x128xf32, #tpu.memory_space<vmem>> -> memref<1x128xf32, #tpu.memory_space<vmem>>
      %128 = tpu.memref_squeeze %127 : memref<1x128xf32, #tpu.memory_space<vmem>> -> memref<128xf32, #tpu.memory_space<vmem>>
      %129 = tpu.memref_slice %arg8[%c4_i32_67] : memref<8x!tpu.dma_semaphore, #tpu.memory_space<semaphore_mem>> -> memref<1x!tpu.dma_semaphore, #tpu.memory_space<semaphore_mem>>
      %130 = tpu.memref_squeeze %129 : memref<1x!tpu.dma_semaphore, #tpu.memory_space<semaphore_mem>> -> memref<!tpu.dma_semaphore, #tpu.memory_space<semaphore_mem>>
      tpu.wait_dma2 semaphore(%130 : memref<!tpu.dma_semaphore, #tpu.memory_space<semaphore_mem>>) src(%126 : memref<128xf32, #tpu.memory_space<any>>) dst(%128 : memref<128xf32, #tpu.memory_space<vmem>>)
      %c5_70 = arith.constant 5 : index
      %131 = memref.load %arg1[%c5_70] : memref<8xi32, #tpu.memory_space<smem>>
      %c5_i32_71 = arith.constant 5 : i32
      %c5_i32_72 = arith.constant 5 : i32
      %c0_i32_73 = arith.constant 0 : i32
      %132 = tpu.memref_slice %arg2[%131, %c0_i32_73] : memref<100x128xf32, #tpu.memory_space<any>> -> memref<1x128xf32, #tpu.memory_space<any>>
      %133 = tpu.memref_squeeze %132 : memref<1x128xf32, #tpu.memory_space<any>> -> memref<128xf32, #tpu.memory_space<any>>
      %c0_i32_74 = arith.constant 0 : i32
      %134 = tpu.memref_slice %arg7[%c5_i32_71, %c0_i32_74] : memref<8x128xf32, #tpu.memory_space<vmem>> -> memref<1x128xf32, #tpu.memory_space<vmem>>
      %135 = tpu.memref_squeeze %134 : memref<1x128xf32, #tpu.memory_space<vmem>> -> memref<128xf32, #tpu.memory_space<vmem>>
      %136 = tpu.memref_slice %arg8[%c5_i32_72] : memref<8x!tpu.dma_semaphore, #tpu.memory_space<semaphore_mem>> -> memref<1x!tpu.dma_semaphore, #tpu.memory_space<semaphore_mem>>
      %137 = tpu.memref_squeeze %136 : memref<1x!tpu.dma_semaphore, #tpu.memory_space<semaphore_mem>> -> memref<!tpu.dma_semaphore, #tpu.memory_space<semaphore_mem>>
      tpu.wait_dma2 semaphore(%137 : memref<!tpu.dma_semaphore, #tpu.memory_space<semaphore_mem>>) src(%133 : memref<128xf32, #tpu.memory_space<any>>) dst(%135 : memref<128xf32, #tpu.memory_space<vmem>>)
      %c6_75 = arith.constant 6 : index
      %138 = memref.load %arg1[%c6_75] : memref<8xi32, #tpu.memory_space<smem>>
      %c6_i32_76 = arith.constant 6 : i32
      %c6_i32_77 = arith.constant 6 : i32
      %c0_i32_78 = arith.constant 0 : i32
      %139 = tpu.memref_slice %arg2[%138, %c0_i32_78] : memref<100x128xf32, #tpu.memory_space<any>> -> memref<1x128xf32, #tpu.memory_space<any>>
      %140 = tpu.memref_squeeze %139 : memref<1x128xf32, #tpu.memory_space<any>> -> memref<128xf32, #tpu.memory_space<any>>
      %c0_i32_79 = arith.constant 0 : i32
      %141 = tpu.memref_slice %arg7[%c6_i32_76, %c0_i32_79] : memref<8x128xf32, #tpu.memory_space<vmem>> -> memref<1x128xf32, #tpu.memory_space<vmem>>
      %142 = tpu.memref_squeeze %141 : memref<1x128xf32, #tpu.memory_space<vmem>> -> memref<128xf32, #tpu.memory_space<vmem>>
      %143 = tpu.memref_slice %arg8[%c6_i32_77] : memref<8x!tpu.dma_semaphore, #tpu.memory_space<semaphore_mem>> -> memref<1x!tpu.dma_semaphore, #tpu.memory_space<semaphore_mem>>
      %144 = tpu.memref_squeeze %143 : memref<1x!tpu.dma_semaphore, #tpu.memory_space<semaphore_mem>> -> memref<!tpu.dma_semaphore, #tpu.memory_space<semaphore_mem>>
      tpu.wait_dma2 semaphore(%144 : memref<!tpu.dma_semaphore, #tpu.memory_space<semaphore_mem>>) src(%140 : memref<128xf32, #tpu.memory_space<any>>) dst(%142 : memref<128xf32, #tpu.memory_space<vmem>>)
      %c7_80 = arith.constant 7 : index
      %145 = memref.load %arg1[%c7_80] : memref<8xi32, #tpu.memory_space<smem>>
      %c7_i32_81 = arith.constant 7 : i32
      %c7_i32_82 = arith.constant 7 : i32
      %c0_i32_83 = arith.constant 0 : i32
      %146 = tpu.memref_slice %arg2[%145, %c0_i32_83] : memref<100x128xf32, #tpu.memory_space<any>> -> memref<1x128xf32, #tpu.memory_space<any>>
      %147 = tpu.memref_squeeze %146 : memref<1x128xf32, #tpu.memory_space<any>> -> memref<128xf32, #tpu.memory_space<any>>
      %c0_i32_84 = arith.constant 0 : i32
      %148 = tpu.memref_slice %arg7[%c7_i32_81, %c0_i32_84] : memref<8x128xf32, #tpu.memory_space<vmem>> -> memref<1x128xf32, #tpu.memory_space<vmem>>
      %149 = tpu.memref_squeeze %148 : memref<1x128xf32, #tpu.memory_space<vmem>> -> memref<128xf32, #tpu.memory_space<vmem>>
      %150 = tpu.memref_slice %arg8[%c7_i32_82] : memref<8x!tpu.dma_semaphore, #tpu.memory_space<semaphore_mem>> -> memref<1x!tpu.dma_semaphore, #tpu.memory_space<semaphore_mem>>
      %151 = tpu.memref_squeeze %150 : memref<1x!tpu.dma_semaphore, #tpu.memory_space<semaphore_mem>> -> memref<!tpu.dma_semaphore, #tpu.memory_space<semaphore_mem>>
      tpu.wait_dma2 semaphore(%151 : memref<!tpu.dma_semaphore, #tpu.memory_space<semaphore_mem>>) src(%147 : memref<128xf32, #tpu.memory_space<any>>) dst(%149 : memref<128xf32, #tpu.memory_space<vmem>>)
    } else {
    }
    %c0 = arith.constant 0 : index
    %c0_1 = arith.constant 0 : index
    %3 = vector.load %arg7[%c0, %c0_1] : memref<8x128xf32, #tpu.memory_space<vmem>>, vector<8x128xf32>
    %c0_2 = arith.constant 0 : index
    %c0_3 = arith.constant 0 : index
    %c0_4 = arith.constant 0 : index
    %4 = vector.load %arg5[%c0_2, %c0_3, %c0_4] : memref<1x8x128xf32, #tpu.memory_space<vmem>>, vector<1x8x128xf32>
    %5 = vector.shape_cast %4 : vector<1x8x128xf32> to vector<8x128xf32>
    %6 = tpu.concatenate %3, %5 in 1 : vector<8x128xf32>, vector<8x128xf32> -> vector<8x256xf32>
    %c0_5 = arith.constant 0 : index
    %c0_6 = arith.constant 0 : index
    %c0_7 = arith.constant 0 : index
    %7 = vector.load %arg3[%c0_5, %c0_6, %c0_7] : memref<1x256x512xf32, #tpu.memory_space<vmem>>, vector<1x256x512xf32>
    %8 = vector.shape_cast %7 : vector<1x256x512xf32> to vector<256x512xf32>
    %cst = arith.constant dense<0.000000e+00> : vector<8x512xf32>
    %9 = tpu.matmul %6, %8, %cst {dimension_numbers = #tpu.dot_dimension_numbers<[1], [0], [0], [1], [0, 0, 1, 1], [], []>} : vector<8x256xf32>, vector<256x512xf32>, vector<8x512xf32> -> vector<8x512xf32>
    %c0_8 = arith.constant 0 : index
    %c0_9 = arith.constant 0 : index
    %c0_10 = arith.constant 0 : index
    %10 = vector.load %arg4[%c0_8, %c0_9, %c0_10] : memref<1x1x512xf32, #tpu.memory_space<vmem>>, vector<1x1x512xf32>
    %11 = vector.shape_cast %10 : vector<1x1x512xf32> to vector<1x512xf32>
    %12 = vector.broadcast %11 : vector<1x512xf32> to vector<8x512xf32>
    %13 = arith.addf %9, %12 : vector<8x512xf32>
    %14 = vector.extract_strided_slice %13 {offsets = [0, 0], sizes = [8, 128], strides = [1, 1]} : vector<8x512xf32> to vector<8x128xf32>
    %15 = arith.negf %14 : vector<8x128xf32>
    %16 = math.exp %15 : vector<8x128xf32>
    %cst_11 = arith.constant 1.000000e+00 : f32
    %17 = vector.broadcast %cst_11 : f32 to vector<8x128xf32>
    %18 = arith.addf %17, %16 : vector<8x128xf32>
    %19 = arith.divf %17, %18 : vector<8x128xf32>
    %20 = vector.extract_strided_slice %13 {offsets = [0, 128], sizes = [8, 128], strides = [1, 1]} : vector<8x512xf32> to vector<8x128xf32>
    %21 = arith.negf %20 : vector<8x128xf32>
    %22 = math.exp %21 : vector<8x128xf32>
    %cst_12 = arith.constant 1.000000e+00 : f32
    %23 = vector.broadcast %cst_12 : f32 to vector<8x128xf32>
    %24 = arith.addf %23, %22 : vector<8x128xf32>
    %25 = arith.divf %23, %24 : vector<8x128xf32>
    %26 = vector.extract_strided_slice %13 {offsets = [0, 256], sizes = [8, 128], strides = [1, 1]} : vector<8x512xf32> to vector<8x128xf32>
    %27 = vector.extract_strided_slice %13 {offsets = [0, 384], sizes = [8, 128], strides = [1, 1]} : vector<8x512xf32> to vector<8x128xf32>
    %28 = arith.mulf %19, %27 : vector<8x128xf32>
    %29 = arith.addf %26, %28 : vector<8x128xf32>
    %30 = math.tanh %29 : vector<8x128xf32>
    %cst_13 = arith.constant 1.000000e+00 : f32
    %31 = vector.broadcast %cst_13 : f32 to vector<8x128xf32>
    %32 = arith.subf %31, %25 : vector<8x128xf32>
    %33 = arith.mulf %32, %30 : vector<8x128xf32>
    %34 = arith.mulf %25, %5 : vector<8x128xf32>
    %35 = arith.addf %33, %34 : vector<8x128xf32>
    %c0_14 = arith.constant 0 : index
    %c0_15 = arith.constant 0 : index
    %c0_16 = arith.constant 0 : index
    %36 = vector.load %arg6[%c0_14, %c0_15, %c0_16] : memref<1x8x128xf32, #tpu.memory_space<vmem>>, vector<1x8x128xf32>
    %37 = vector.shape_cast %36 : vector<1x8x128xf32> to vector<8x128xf32>
    %38 = vector.shape_cast %35 : vector<8x128xf32> to vector<1x8x128xf32>
    tpu.vector_store %arg6[%c0_14, %c0_15, %c0_16], %38 {strides = array<i32>} : memref<1x8x128xf32, #tpu.memory_space<vmem>>, vector<1x8x128xf32>,
    %c0_17 = arith.constant 0 : index
    %c0_18 = arith.constant 0 : index
    %39 = vector.load %arg7[%c0_17, %c0_18] : memref<8x128xf32, #tpu.memory_space<vmem>>, vector<8x128xf32>
    tpu.vector_store %arg7[%c0_17, %c0_18], %35 {strides = array<i32>} : memref<8x128xf32, #tpu.memory_space<vmem>>, vector<8x128xf32>,
    return
  }
  func.func @transform_1(%arg0: i32, %arg1: memref<8xi32, #tpu.memory_space<smem>>) -> (i32, i32, i32) {
    %c0_i32 = arith.constant 0 : i32
    %c0_i32_0 = arith.constant 0 : i32
    %c0_i32_1 = arith.constant 0 : i32
    return %arg0, %c0_i32, %c0_i32_0 : i32, i32, i32
  }
  func.func @transform_2(%arg0: i32, %arg1: memref<8xi32, #tpu.memory_space<smem>>) -> (i32, i32, i32) {
    %c0_i32 = arith.constant 0 : i32
    %c0_i32_0 = arith.constant 0 : i32
    %c0_i32_1 = arith.constant 0 : i32
    return %arg0, %c0_i32, %c0_i32_0 : i32, i32, i32
  }
  func.func @transform_3(%arg0: i32, %arg1: memref<8xi32, #tpu.memory_space<smem>>) -> (i32, i32, i32) {
    %c0_i32 = arith.constant 0 : i32
    %c0_i32_0 = arith.constant 0 : i32
    %c0_i32_1 = arith.constant 0 : i32
    return %arg0, %c0_i32, %c0_i32_0 : i32, i32, i32
  }
  func.func @transform_4(%arg0: i32, %arg1: memref<8xi32, #tpu.memory_space<smem>>) -> (i32, i32, i32) {
    %c0_i32 = arith.constant 0 : i32
    %c0_i32_0 = arith.constant 0 : i32
    %c0_i32_1 = arith.constant 0 : i32
    return %arg0, %c0_i32, %c0_i32_0 : i32, i32, i32
  }
}

</mosaic_0001>

<llo_original>
// kernel: encoder_rnn_forward.1
$region0: #{encoder_rnn_forward.1}
  #allocation0 [shape = 'u32[]', space=smem, size = 0x4, offset = 0x4, fixed_abs, tag = 'smem constant byte address 0x4 - core index']
  #allocation1 [shape = 'u32[144,128]{1,0:T(1,128)}', space=vmem, size = 0x12000, scoped, tag = 'internal scratch']
  #allocation2 [shape = 'f32[8,128]{1,0:T(8,128)}', space=vmem, size = 0x1000, scoped, tag = 'scratch operand']
  #allocation3 [shape = 's32[8]{0}', space=sflag, size = 0x20, scoped, tag = 'scratch operand']
  #allocation4 [shape = 's32[1]{0}', space=sflag, size = 0x4, scoped, tag = 'scoped memory for encoder_rnn_forward.1']
  #allocation5 [shape = 'u8[512]{0}', space=smem, size = 0x200, scoped, tag = 'prefetched SMEM operand 0']
  #allocation8 [shape = 's32[]', space=sflag, size = 0x4, offset = 0, fixed_abs, tag = 'sflag constant byte address 0x0 - dummy sync flag']
  #allocation9 [shape = 's32[]', space=sflag, size = 0x4, offset = 0, fixed_abs, tag = 'sflag constant byte address 0x0 - dummy sync flag']
  #allocation10 [shape = 'u32[]', space=smem, size = 0x4, offset = 0x44, fixed_abs, tag = 'smem constant byte address 0x44 - assertion arg 0']
  #allocation11 [shape = 'u32[]', space=smem, size = 0x4, offset = 0x48, fixed_abs, tag = 'smem constant byte address 0x48 - assertion arg 1']
  #allocation12 [shape = 's32[]', space=sflag, size = 0x4, offset = 0, fixed_abs, tag = 'sflag constant byte address 0x0 - dummy sync flag']
  #allocation13 [shape = 's32[]', space=sflag, size = 0x4, offset = 0, fixed_abs, tag = 'sflag constant byte address 0x0 - dummy sync flag']
  #allocation14 [shape = 's32[]', space=sflag, size = 0x4, offset = 0, fixed_abs, tag = 'sflag constant byte address 0x0 - dummy sync flag']
  #allocation15 [shape = 's32[]', space=sflag, size = 0x4, offset = 0, fixed_abs, tag = 'sflag constant byte address 0x0 - dummy sync flag']
  #allocation16 [shape = 's32[]', space=sflag, size = 0x4, offset = 0, fixed_abs, tag = 'sflag constant byte address 0x0 - dummy sync flag']
  #allocation17 [shape = 's32[]', space=sflag, size = 0x4, offset = 0, fixed_abs, tag = 'sflag constant byte address 0x0 - dummy sync flag']
  #allocation18 [shape = 's32[]', space=sflag, size = 0x4, offset = 0, fixed_abs, tag = 'sflag constant byte address 0x0 - dummy sync flag']
  #allocation19 [shape = 's32[]', space=sflag, size = 0x4, offset = 0, fixed_abs, tag = 'sflag constant byte address 0x0 - dummy sync flag']
  #allocation20 [shape = 's32[]', space=sflag, size = 0x4, offset = 0, fixed_abs, tag = 'sflag constant byte address 0x0 - dummy sync flag']
  #allocation21 [shape = 's32[]', space=sflag, size = 0x4, offset = 0, fixed_abs, tag = 'sflag constant byte address 0x0 - dummy sync flag']
  #allocation22 [shape = 's32[]', space=sflag, size = 0x4, offset = 0, fixed_abs, tag = 'sflag constant byte address 0x0 - dummy sync flag']
  #allocation23 [shape = 's32[]', space=sflag, size = 0x4, offset = 0, fixed_abs, tag = 'sflag constant byte address 0x0 - dummy sync flag']
  #allocation24 [shape = 's32[]', space=sflag, size = 0x4, offset = 0, fixed_abs, tag = 'sflag constant byte address 0x0 - dummy sync flag']
  #allocation25 [shape = 's32[]', space=sflag, size = 0x4, offset = 0, fixed_abs, tag = 'sflag constant byte address 0x0 - dummy sync flag']
  %s0 = inlined_call_operand.vmem [shape: s32[8], index: 0, kind: input, shape index: {}]
  %s1 = inlined_call_operand.hbm [shape: f32[100,128], index: 1, kind: input, shape index: {}]
  %s2 = inlined_call_operand.hbm [shape: f32[2,256,512], index: 2, kind: input, shape index: {}]
  %s3 = inlined_call_operand.vmem [shape: f32[2,1,512], index: 3, kind: input, shape index: {}]
  %s4 = inlined_call_operand.vmem [shape: f32[2,8,128], index: 4, kind: input, shape index: {}]
  %s5 = inlined_call_operand.vmem [shape: f32[2,8,128], index: 5, kind: output, shape index: {}]
  %s6 = sld [smem:[#allocation0]]
  $region85: #{encoder_rnn_forward.1} parent=0
    _
  %s8 = ssub.s32 1, %s6
  %s9 = scalar_select 0, %s8, %s6
  %s10 = sshll.u32 %s0, 4
  %s11 = int_to_ptr.vmem [resolvable:$true] %s10
  %13 = dma.vmem_to_smem %s11, 16, [#allocation5], [#allocation4]
  %14 = dma.done [#allocation4], 16
  %15 = sfence
  $region1: #{encoder_rnn_forward.1} parent=0
    #allocation6 [shape = 'u8[1048576]{0}', space=vmem, size = 0x100000, scoped, tag = 'input window, operand 2']
    #allocation7 [shape = 's32[2]{0}', space=sflag, size = 0x8, scoped, tag = 'scoped memory for encoder_rnn_forward.1']
    %16 = vsyncpa [#allocation7], 0
    %s17 = scalar_lea.sflag [#allocation7], 1
    %18 = vsyncpa %s17, 0
    loop: start=0, step=1, limit=4
    $region2: #{encoder_rnn_forward.1} parent=1 // loop_pre_header
      _
    $region3: #{encoder_rnn_forward.1} parent=1 // loop_header
      %s20 = sphi 0, %s24
      %p21 = scmp.ge.s32.totalorder %s20, 4
      %s30 = sphi 0, %s32
      %s33 = sphi 0, %s30
      %s34 = sphi 0, %s33
      %s50 = sphi 0, %s34
      %s56 = sphi 0, %s58
      %s59 = sphi 0, %s56
      %s60 = sphi 0, %s59
      %s76 = sphi 0, %s60
      %s82 = sphi 0, %s84
      %s85 = sphi 0, %s82
      %s86 = sphi 0, %s85
      %s102 = sphi 0, %s86
      %s108 = sphi 0, %s110
      %s111 = sphi 0, %s108
      %s112 = sphi 0, %s111
      %s128 = sphi 0, %s112
    $region4: #{encoder_rnn_forward.1} parent=1 // loop_header_branch
      %23 = sbr.rel (%p21) target = $region8
    $region5: #{encoder_rnn_forward.1} parent=1 // loop_body
      %s25 = ssub.s32 %s20, 1
      %s26 = ssub.s32 %s20, 2
      %s27 = sadd.s32 %s20, 1
      %s28 = ssub.s32 %s20, %s27
      %p29 = scmp.eq.s32.totalorder %s28, 0
      %s31 = sadd.s32 %s30, 1
      %s32 = scalar_select %p29, %s30, %s31
      %p35 = pneg %p29
      %p36 = scmp.eq.s32.totalorder %s20, 1
      %p37 = por %p35, %p36
      %p38 = scmp.ne.s32.totalorder %s30, %s33
      %p39 = scmp.eq.s32.totalorder %s20, 0
      %p40 = por %p38, %p39
      %p41 = scmp.ne.s32.totalorder %s30, %s33
      %p42 = scmp.eq.s32.totalorder %s25, 1
      %p43 = por %p41, %p42
      %p44 = scmp.ne.s32.totalorder %s33, %s34
      %p45 = scmp.eq.s32.totalorder %s25, 0
      %p46 = por %p44, %p45
      %p47 = scmp.ne.s32.totalorder %s33, %s34
      %p48 = scmp.eq.s32.totalorder %s26, 1
      %p49 = por %p47, %p48
      %p51 = scmp.ne.s32.totalorder %s34, %s50
      %p52 = scmp.eq.s32.totalorder %s26, 0
      %p53 = por %p51, %p52
      %s54 = ssub.s32 %s20, %s27
      %p55 = scmp.eq.s32.totalorder %s54, 0
      %s57 = sadd.s32 %s56, 1
      %s58 = scalar_select %p55, %s56, %s57
      %p61 = pneg %p55
      %p62 = scmp.eq.s32.totalorder %s20, 1
      %p63 = por %p61, %p62
      %p64 = scmp.ne.s32.totalorder %s56, %s59
      %p65 = scmp.eq.s32.totalorder %s20, 0
      %p66 = por %p64, %p65
      %p67 = scmp.ne.s32.totalorder %s56, %s59
      %p68 = scmp.eq.s32.totalorder %s25, 1
      %p69 = por %p67, %p68
      %p70 = scmp.ne.s32.totalorder %s59, %s60
      %p71 = scmp.eq.s32.totalorder %s25, 0
      %p72 = por %p70, %p71
      %p73 = scmp.ne.s32.totalorder %s59, %s60
      %p74 = scmp.eq.s32.totalorder %s26, 1
      %p75 = por %p73, %p74
      %p77 = scmp.ne.s32.totalorder %s60, %s76
      %p78 = scmp.eq.s32.totalorder %s26, 0
      %p79 = por %p77, %p78
      %s80 = ssub.s32 %s20, %s27
      %p81 = scmp.eq.s32.totalorder %s80, 0
      %s83 = sadd.s32 %s82, 1
      %s84 = scalar_select %p81, %s82, %s83
      %p87 = pneg %p81
      %p88 = scmp.eq.s32.totalorder %s20, 1
      %p89 = por %p87, %p88
      %p90 = scmp.ne.s32.totalorder %s82, %s85
      %p91 = scmp.eq.s32.totalorder %s20, 0
      %p92 = por %p90, %p91
      %p93 = scmp.ne.s32.totalorder %s82, %s85
      %p94 = scmp.eq.s32.totalorder %s25, 1
      %p95 = por %p93, %p94
      %p96 = scmp.ne.s32.totalorder %s85, %s86
      %p97 = scmp.eq.s32.totalorder %s25, 0
      %p98 = por %p96, %p97
      %p99 = scmp.ne.s32.totalorder %s85, %s86
      %p100 = scmp.eq.s32.totalorder %s26, 1
      %p101 = por %p99, %p100
      %p103 = scmp.ne.s32.totalorder %s86, %s102
      %p104 = scmp.eq.s32.totalorder %s26, 0
      %p105 = por %p103, %p104
      %s106 = ssub.s32 %s20, %s27
      %p107 = scmp.eq.s32.totalorder %s106, 0
      %s109 = sadd.s32 %s108, 1
      %s110 = scalar_select %p107, %s108, %s109
      %p113 = pneg %p107
      %p114 = scmp.eq.s32.totalorder %s20, 1
      %p115 = por %p113, %p114
      %p116 = scmp.ne.s32.totalorder %s108, %s111
      %p117 = scmp.eq.s32.totalorder %s20, 0
      %p118 = por %p116, %p117
      %p119 = scmp.ne.s32.totalorder %s108, %s111
      %p120 = scmp.eq.s32.totalorder %s25, 1
      %p121 = por %p119, %p120
      %p122 = scmp.ne.s32.totalorder %s111, %s112
      %p123 = scmp.eq.s32.totalorder %s25, 0
      %p124 = por %p122, %p123
      %p125 = scmp.ne.s32.totalorder %s111, %s112
      %p126 = scmp.eq.s32.totalorder %s26, 1
      %p127 = por %p125, %p126
      %p129 = scmp.ne.s32.totalorder %s112, %s128
      %p130 = scmp.eq.s32.totalorder %s26, 0
      %p131 = por %p129, %p130
      %p132 = scmp.le.s32.totalorder 1, %s20
      %p133 = scmp.lt.s32.totalorder %s20, 3
      %p134 = pnand %p132, %p133
      %p135 = pneg %p134
      // Predicated region
      $region9: #{encoder_rnn_forward.1} parent=5 // pred_check
        _
      $region10: #{encoder_rnn_forward.1} parent=5 // pred_check_branch
        %137 = sbr.rel (%p134) target = $region12
      $region11: #{encoder_rnn_forward.1} parent=5 // pred_region
        %s138 = ssub.s32 %s20, 1
      $region12: #{encoder_rnn_forward.1} parent=5 // pred_fallthru
        _
      %p139 = scmp.lt.s32.totalorder %s20, 2
      // Predicated region
      $region13: #{encoder_rnn_forward.1} parent=5 // pred_check
        %p140 = pneg %p139
      $region14: #{encoder_rnn_forward.1} parent=5 // pred_check_branch
        %142 = sbr.rel (%p140) target = $region16
      $region15: #{encoder_rnn_forward.1} parent=5 // pred_region
        // Predicated region
        $region17: #{encoder_rnn_forward.1} parent=15 // pred_check
          %p143 = pneg %p40
        $region18: #{encoder_rnn_forward.1} parent=15 // pred_check_branch
          %145 = sbr.rel (%p143) target = $region20
        $region19: #{encoder_rnn_forward.1} parent=15 // pred_region
          %s146 = sand.u32 %s30, 1
          %s147 = scalar_lea.sflag [#allocation7], %s146
          %s148 = sand.u32 %s30, 1
          %s149 = smul.addr %s148, 1024
          %s150 = scalar_lea.vmem [#allocation6], %s149
          %s152 = ssub.s32 16384, 16384
          %153 = vsyncadd %s147, %s152
          %s154 = smul.addr %s20, 128
          %s155 = smul.addr %s154, 128
          %s156 = scalar_lea.hbm %s2, %s155
          %s157 = sshll.u32 %s150, 4
          %s158 = int_to_ptr.vmem [resolvable:$true] %s157
          %163 = dma.hbm_to_vmem [thread:$0]  %s156, 16384, %s158, %s147, 512, 512, 32
        $region20: #{encoder_rnn_forward.1} parent=15 // pred_fallthru
          _
        // Predicated region
        $region21: #{encoder_rnn_forward.1} parent=15 // pred_check
          %p164 = pneg %p66
        $region22: #{encoder_rnn_forward.1} parent=15 // pred_check_branch
          %166 = sbr.rel (%p164) target = $region24
        $region23: #{encoder_rnn_forward.1} parent=15 // pred_region
          %p167 = scmp.lt.s32.totalorder %s20, 1
          %s168 = scalar_select %p167, %s20, 1
          %s169 = smul.addr %s168, 4
          %s170 = scalar_lea.vmem %s3, %s169
        $region24: #{encoder_rnn_forward.1} parent=15 // pred_fallthru
          _
        // Predicated region
        $region25: #{encoder_rnn_forward.1} parent=15 // pred_check
          %p171 = pneg %p92
        $region26: #{encoder_rnn_forward.1} parent=15 // pred_check_branch
          %173 = sbr.rel (%p171) target = $region28
        $region27: #{encoder_rnn_forward.1} parent=15 // pred_region
          %p174 = scmp.lt.s32.totalorder %s20, 1
          %s175 = scalar_select %p174, %s20, 1
          %s176 = smul.addr %s175, 8
          %s177 = scalar_lea.vmem %s4, %s176
        $region28: #{encoder_rnn_forward.1} parent=15 // pred_fallthru
          _
      $region16: #{encoder_rnn_forward.1} parent=5 // pred_fallthru
        _
      %p178 = scmp.le.s32.totalorder 1, %s20
      %p179 = scmp.lt.s32.totalorder %s20, 3
      %p180 = pnand %p178, %p179
      %p181 = pneg %p180
      // Predicated region
      $region29: #{encoder_rnn_forward.1} parent=5 // pred_check
        _
      $region30: #{encoder_rnn_forward.1} parent=5 // pred_check_branch
        %183 = sbr.rel (%p180) target = $region32
      $region31: #{encoder_rnn_forward.1} parent=5 // pred_region
        %s184 = ssub.s32 %s20, 1
        %s185 = sand.u32 %s33, 1
        %s186 = scalar_lea.sflag [#allocation7], %s185
        %s187 = sand.u32 %s33, 1
        %s188 = smul.addr %s187, 1024
        %s189 = scalar_lea.vmem [#allocation6], %s188
        // Predicated region
        $region33: #{encoder_rnn_forward.1} parent=31 // pred_check
          %p190 = pneg %p46
        $region34: #{encoder_rnn_forward.1} parent=31 // pred_check_branch
          %192 = sbr.rel (%p190) target = $region36
        $region35: #{encoder_rnn_forward.1} parent=31 // pred_region
          %193 = dma.done %s186, 16384
        $region36: #{encoder_rnn_forward.1} parent=31 // pred_fallthru
          _
        %s194 = sand.u32 %s33, 1
        %s195 = scalar_lea.sflag [#allocation7], %s194
        %s196 = sand.u32 %s33, 1
        %s197 = smul.addr %s196, 1024
        %s198 = scalar_lea.vmem [#allocation6], %s197
        %p199 = pneg %p46
        %p200 = pneg %p43
        %p201 = scmp.lt.s32.totalorder %s25, 1
        %s202 = scalar_select %p201, %s25, 1
        %s203 = smul.addr %s202, 4
        %s204 = scalar_lea.vmem %s3, %s203
        %p205 = pneg %p72
        %p206 = pneg %p69
        %p207 = scmp.lt.s32.totalorder %s25, 1
        %s208 = scalar_select %p207, %s25, 1
        %s209 = smul.addr %s208, 8
        %s210 = scalar_lea.vmem %s4, %s209
        %p211 = pneg %p98
        %p212 = pneg %p95
        %p213 = pneg %p124
        %p214 = pneg %p121
        %p215 = scmp.lt.s32.totalorder %s25, 1
        %s216 = scalar_select %p215, %s25, 1
        %s217 = smul.addr %s216, 8
        %s218 = scalar_lea.vmem %s5, %s217
        %p219 = scmp.lt.s32.totalorder %s25, 1
        %s220 = scalar_select %p219, %s25, 1
        %s221 = smul.addr %s220, 4
        %s222 = scalar_lea.vmem %s3, %s221
        %p223 = scmp.lt.s32.totalorder %s25, 1
        %s224 = scalar_select %p223, %s25, 1
        %s225 = smul.addr %s224, 8
        %s226 = scalar_lea.vmem %s4, %s225
        %p227 = scmp.lt.s32.totalorder %s25, 1
        %s228 = scalar_select %p227, %s25, 1
        %s229 = smul.addr %s228, 8
        %s230 = scalar_lea.vmem %s5, %s229
        %p231 = scmp.eq.s32.totalorder %s25, 0
        // Predicated region
        $region37: #{encoder_rnn_forward.1} parent=31 // pred_check
          %p232 = pneg %p231
        $region38: #{encoder_rnn_forward.1} parent=31 // pred_check_branch
          %234 = sbr.rel (%p232) target = $region40
        $region39: #{encoder_rnn_forward.1} parent=31 // pred_region
          %s235 = sld [smem:[#allocation5]]
          %s236 = smul.addr %s235, 16
          %s237 = scalar_lea.hbm %s1, %s236
          // Predicated region
          $region41: #{encoder_rnn_forward.1} parent=39 // pred_check
            _
          $region42: #{encoder_rnn_forward.1} parent=39 // pred_check_branch
            %239 = sbr.rel target = $region44
          $region43: #{encoder_rnn_forward.1} parent=39 // pred_region
            %240 = sst [smem:[#allocation10]] [#allocation9]
            %241 = sst [smem:[#allocation11]] [#allocation8]
          $region44: #{encoder_rnn_forward.1} parent=39 // pred_fallthru
            _
          %243 = shalt.err (0)
          %s245 = sshll.u32 [#allocation2], 4
          %s246 = int_to_ptr.vmem [resolvable:$true] %s245
          %248 = dma.hbm_to_vmem [thread:$0]  %s237, 16, %s246, [#allocation3]
          %s249 = sld [smem:[#allocation5 + $0x1]]
          %s250 = smul.addr %s249, 16
          %s251 = scalar_lea.hbm %s1, %s250
          %s252 = scalar_lea.vmem [#allocation2], 1
          %s253 = scalar_lea.sflag [#allocation3], 1
          // Predicated region
          $region45: #{encoder_rnn_forward.1} parent=39 // pred_check
            _
          $region46: #{encoder_rnn_forward.1} parent=39 // pred_check_branch
            %255 = sbr.rel target = $region48
          $region47: #{encoder_rnn_forward.1} parent=39 // pred_region
            %256 = sst [smem:[#allocation10]] [#allocation13]
            %257 = sst [smem:[#allocation11]] [#allocation12]
          $region48: #{encoder_rnn_forward.1} parent=39 // pred_fallthru
            _
          %259 = shalt.err (0)
          %s261 = sshll.u32 %s252, 4
          %s262 = int_to_ptr.vmem [resolvable:$true] %s261
          %264 = dma.hbm_to_vmem [thread:$0]  %s251, 16, %s262, %s253
          %s265 = sld [smem:[#allocation5 + $0x2]]
          %s266 = smul.addr %s265, 16
          %s267 = scalar_lea.hbm %s1, %s266
          %s268 = scalar_lea.vmem [#allocation2], 2
          %s269 = scalar_lea.sflag [#allocation3], 2
          // Predicated region
          $region49: #{encoder_rnn_forward.1} parent=39 // pred_check
            _
          $region50: #{encoder_rnn_forward.1} parent=39 // pred_check_branch
            %271 = sbr.rel target = $region52
          $region51: #{encoder_rnn_forward.1} parent=39 // pred_region
            %272 = sst [smem:[#allocation10]] [#allocation15]
            %273 = sst [smem:[#allocation11]] [#allocation14]
          $region52: #{encoder_rnn_forward.1} parent=39 // pred_fallthru
            _
          %275 = shalt.err (0)
          %s277 = sshll.u32 %s268, 4
          %s278 = int_to_ptr.vmem [resolvable:$true] %s277
          %280 = dma.hbm_to_vmem [thread:$0]  %s267, 16, %s278, %s269
          %s281 = sld [smem:[#allocation5 + $0x3]]
          %s282 = smul.addr %s281, 16
          %s283 = scalar_lea.hbm %s1, %s282
          %s284 = scalar_lea.vmem [#allocation2], 3
          %s285 = scalar_lea.sflag [#allocation3], 3
          // Predicated region
          $region53: #{encoder_rnn_forward.1} parent=39 // pred_check
            _
          $region54: #{encoder_rnn_forward.1} parent=39 // pred_check_branch
            %287 = sbr.rel target = $region56
          $region55: #{encoder_rnn_forward.1} parent=39 // pred_region
            %288 = sst [smem:[#allocation10]] [#allocation17]
            %289 = sst [smem:[#allocation11]] [#allocation16]
          $region56: #{encoder_rnn_forward.1} parent=39 // pred_fallthru
            _
          %291 = shalt.err (0)
          %s293 = sshll.u32 %s284, 4
          %s294 = int_to_ptr.vmem [resolvable:$true] %s293
          %296 = dma.hbm_to_vmem [thread:$0]  %s283, 16, %s294, %s285
          %s297 = sld [smem:[#allocation5 + $0x4]]
          %s298 = smul.addr %s297, 16
          %s299 = scalar_lea.hbm %s1, %s298
          %s300 = scalar_lea.vmem [#allocation2], 4
          %s301 = scalar_lea.sflag [#allocation3], 4
          // Predicated region
          $region57: #{encoder_rnn_forward.1} parent=39 // pred_check
            _
          $region58: #{encoder_rnn_forward.1} parent=39 // pred_check_branch
            %303 = sbr.rel target = $region60
          $region59: #{encoder_rnn_forward.1} parent=39 // pred_region
            %304 = sst [smem:[#allocation10]] [#allocation19]
            %305 = sst [smem:[#allocation11]] [#allocation18]
          $region60: #{encoder_rnn_forward.1} parent=39 // pred_fallthru
            _
          %307 = shalt.err (0)
          %s309 = sshll.u32 %s300, 4
          %s310 = int_to_ptr.vmem [resolvable:$true] %s309
          %312 = dma.hbm_to_vmem [thread:$0]  %s299, 16, %s310, %s301
          %s313 = sld [smem:[#allocation5 + $0x5]]
          %s314 = smul.addr %s313, 16
          %s315 = scalar_lea.hbm %s1, %s314
          %s316 = scalar_lea.vmem [#allocation2], 5
          %s317 = scalar_lea.sflag [#allocation3], 5
          // Predicated region
          $region61: #{encoder_rnn_forward.1} parent=39 // pred_check
            _
          $region62: #{encoder_rnn_forward.1} parent=39 // pred_check_branch
            %319 = sbr.rel target = $region64
          $region63: #{encoder_rnn_forward.1} parent=39 // pred_region
            %320 = sst [smem:[#allocation10]] [#allocation21]
            %321 = sst [smem:[#allocation11]] [#allocation20]
          $region64: #{encoder_rnn_forward.1} parent=39 // pred_fallthru
            _
          %323 = shalt.err (0)
          %s325 = sshll.u32 %s316, 4
          %s326 = int_to_ptr.vmem [resolvable:$true] %s325
          %328 = dma.hbm_to_vmem [thread:$0]  %s315, 16, %s326, %s317
          %s329 = sld [smem:[#allocation5 + $0x6]]
          %s330 = smul.addr %s329, 16
          %s331 = scalar_lea.hbm %s1, %s330
          %s332 = scalar_lea.vmem [#allocation2], 6
          %s333 = scalar_lea.sflag [#allocation3], 6
          // Predicated region
          $region65: #{encoder_rnn_forward.1} parent=39 // pred_check
            _
          $region66: #{encoder_rnn_forward.1} parent=39 // pred_check_branch
            %335 = sbr.rel target = $region68
          $region67: #{encoder_rnn_forward.1} parent=39 // pred_region
            %336 = sst [smem:[#allocation10]] [#allocation23]
            %337 = sst [smem:[#allocation11]] [#allocation22]
          $region68: #{encoder_rnn_forward.1} parent=39 // pred_fallthru
            _
          %339 = shalt.err (0)
          %s341 = sshll.u32 %s332, 4
          %s342 = int_to_ptr.vmem [resolvable:$true] %s341
          %344 = dma.hbm_to_vmem [thread:$0]  %s331, 16, %s342, %s333
          %s345 = sld [smem:[#allocation5 + $0x7]]
          %s346 = smul.addr %s345, 16
          %s347 = scalar_lea.hbm %s1, %s346
          %s348 = scalar_lea.vmem [#allocation2], 7
          %s349 = scalar_lea.sflag [#allocation3], 7
          // Predicated region
          $region69: #{encoder_rnn_forward.1} parent=39 // pred_check
            _
          $region70: #{encoder_rnn_forward.1} parent=39 // pred_check_branch
            %351 = sbr.rel target = $region72
          $region71: #{encoder_rnn_forward.1} parent=39 // pred_region
            %352 = sst [smem:[#allocation10]] [#allocation25]
            %353 = sst [smem:[#allocation11]] [#allocation24]
          $region72: #{encoder_rnn_forward.1} parent=39 // pred_fallthru
            _
          %355 = shalt.err (0)
          %s357 = sshll.u32 %s348, 4
          %s358 = int_to_ptr.vmem [resolvable:$true] %s357
          %360 = dma.hbm_to_vmem [thread:$0]  %s347, 16, %s358, %s349
          %s361 = sld [smem:[#allocation5]]
          %363 = dma.done [#allocation3], 16
          %s364 = sld [smem:[#allocation5 + $0x1]]
          %366 = dma.done %s253, 16
          %s367 = sld [smem:[#allocation5 + $0x2]]
          %369 = dma.done %s269, 16
          %s370 = sld [smem:[#allocation5 + $0x3]]
          %372 = dma.done %s285, 16
          %s373 = sld [smem:[#allocation5 + $0x4]]
          %375 = dma.done %s301, 16
          %s376 = sld [smem:[#allocation5 + $0x5]]
          %378 = dma.done %s317, 16
          %s379 = sld [smem:[#allocation5 + $0x6]]
          %381 = dma.done %s333, 16
          %s382 = sld [smem:[#allocation5 + $0x7]]
          %384 = dma.done %s349, 16
        $region40: #{encoder_rnn_forward.1} parent=31 // pred_fallthru
          _
        %v385 = vld [vmem:[#allocation2] sm:$0xff]
        %v386 = vld [vmem:[%s226] sm:$0xff]
        %v387 = vld [vmem:[%s189] sm:$0xff]
        %v388 = vld [vmem:[%s189 + $0x8] sm:$0xff]
        %v389 = vld [vmem:[%s189 + $0x10] sm:$0xff]
        %v390 = vld [vmem:[%s189 + $0x18] sm:$0xff]
        %v391 = vld [vmem:[%s189 + $0x20] sm:$0xff]
        %v392 = vld [vmem:[%s189 + $0x28] sm:$0xff]
        %v393 = vld [vmem:[%s189 + $0x30] sm:$0xff]
        %v394 = vld [vmem:[%s189 + $0x38] sm:$0xff]
        %v395 = vld [vmem:[%s189 + $0x40] sm:$0xff]
        %v396 = vld [vmem:[%s189 + $0x48] sm:$0xff]
        %v397 = vld [vmem:[%s189 + $0x50] sm:$0xff]
        %v398 = vld [vmem:[%s189 + $0x58] sm:$0xff]
        %v399 = vld [vmem:[%s189 + $0x60] sm:$0xff]
        %v400 = vld [vmem:[%s189 + $0x68] sm:$0xff]
        %v401 = vld [vmem:[%s189 + $0x70] sm:$0xff]
        %v402 = vld [vmem:[%s189 + $0x78] sm:$0xff]
        %v403 = vld [vmem:[%s189 + $0x80] sm:$0xff]
        %v404 = vld [vmem:[%s189 + $0x88] sm:$0xff]
        %v405 = vld [vmem:[%s189 + $0x90] sm:$0xff]
        %v406 = vld [vmem:[%s189 + $0x98] sm:$0xff]
        %v407 = vld [vmem:[%s189 + $0xa0] sm:$0xff]
        %v408 = vld [vmem:[%s189 + $0xa8] sm:$0xff]
        %v409 = vld [vmem:[%s189 + $0xb0] sm:$0xff]
        %v410 = vld [vmem:[%s189 + $0xb8] sm:$0xff]
        %v411 = vld [vmem:[%s189 + $0xc0] sm:$0xff]
        %v412 = vld [vmem:[%s189 + $0xc8] sm:$0xff]
        %v413 = vld [vmem:[%s189 + $0xd0] sm:$0xff]
        %v414 = vld [vmem:[%s189 + $0xd8] sm:$0xff]
        %v415 = vld [vmem:[%s189 + $0xe0] sm:$0xff]
        %v416 = vld [vmem:[%s189 + $0xe8] sm:$0xff]
        %v417 = vld [vmem:[%s189 + $0xf0] sm:$0xff]
        %v418 = vld [vmem:[%s189 + $0xf8] sm:$0xff]
        %v419 = vld [vmem:[%s189 + $0x100] sm:$0xff]
        %v420 = vld [vmem:[%s189 + $0x108] sm:$0xff]
        %v421 = vld [vmem:[%s189 + $0x110] sm:$0xff]
        %v422 = vld [vmem:[%s189 + $0x118] sm:$0xff]
        %v423 = vld [vmem:[%s189 + $0x120] sm:$0xff]
        %v424 = vld [vmem:[%s189 + $0x128] sm:$0xff]
        %v425 = vld [vmem:[%s189 + $0x130] sm:$0xff]
        %v426 = vld [vmem:[%s189 + $0x138] sm:$0xff]
        %v427 = vld [vmem:[%s189 + $0x140] sm:$0xff]
        %v428 = vld [vmem:[%s189 + $0x148] sm:$0xff]
        %v429 = vld [vmem:[%s189 + $0x150] sm:$0xff]
        %v430 = vld [vmem:[%s189 + $0x158] sm:$0xff]
        %v431 = vld [vmem:[%s189 + $0x160] sm:$0xff]
        %v432 = vld [vmem:[%s189 + $0x168] sm:$0xff]
        %v433 = vld [vmem:[%s189 + $0x170] sm:$0xff]
        %v434 = vld [vmem:[%s189 + $0x178] sm:$0xff]
        %v435 = vld [vmem:[%s189 + $0x180] sm:$0xff]
        %v436 = vld [vmem:[%s189 + $0x188] sm:$0xff]
        %v437 = vld [vmem:[%s189 + $0x190] sm:$0xff]
        %v438 = vld [vmem:[%s189 + $0x198] sm:$0xff]
        %v439 = vld [vmem:[%s189 + $0x1a0] sm:$0xff]
        %v440 = vld [vmem:[%s189 + $0x1a8] sm:$0xff]
        %v441 = vld [vmem:[%s189 + $0x1b0] sm:$0xff]
        %v442 = vld [vmem:[%s189 + $0x1b8] sm:$0xff]
        %v443 = vld [vmem:[%s189 + $0x1c0] sm:$0xff]
        %v444 = vld [vmem:[%s189 + $0x1c8] sm:$0xff]
        %v445 = vld [vmem:[%s189 + $0x1d0] sm:$0xff]
        %v446 = vld [vmem:[%s189 + $0x1d8] sm:$0xff]
        %v447 = vld [vmem:[%s189 + $0x1e0] sm:$0xff]
        %v448 = vld [vmem:[%s189 + $0x1e8] sm:$0xff]
        %v449 = vld [vmem:[%s189 + $0x1f0] sm:$0xff]
        %v450 = vld [vmem:[%s189 + $0x1f8] sm:$0xff]
        %v451 = vld [vmem:[%s189 + $0x200] sm:$0xff]
        %v452 = vld [vmem:[%s189 + $0x208] sm:$0xff]
        %v453 = vld [vmem:[%s189 + $0x210] sm:$0xff]
        %v454 = vld [vmem:[%s189 + $0x218] sm:$0xff]
        %v455 = vld [vmem:[%s189 + $0x220] sm:$0xff]
        %v456 = vld [vmem:[%s189 + $0x228] sm:$0xff]
        %v457 = vld [vmem:[%s189 + $0x230] sm:$0xff]
        %v458 = vld [vmem:[%s189 + $0x238] sm:$0xff]
        %v459 = vld [vmem:[%s189 + $0x240] sm:$0xff]
        %v460 = vld [vmem:[%s189 + $0x248] sm:$0xff]
        %v461 = vld [vmem:[%s189 + $0x250] sm:$0xff]
        %v462 = vld [vmem:[%s189 + $0x258] sm:$0xff]
        %v463 = vld [vmem:[%s189 + $0x260] sm:$0xff]
        %v464 = vld [vmem:[%s189 + $0x268] sm:$0xff]
        %v465 = vld [vmem:[%s189 + $0x270] sm:$0xff]
        %v466 = vld [vmem:[%s189 + $0x278] sm:$0xff]
        %v467 = vld [vmem:[%s189 + $0x280] sm:$0xff]
        %v468 = vld [vmem:[%s189 + $0x288] sm:$0xff]
        %v469 = vld [vmem:[%s189 + $0x290] sm:$0xff]
        %v470 = vld [vmem:[%s189 + $0x298] sm:$0xff]
        %v471 = vld [vmem:[%s189 + $0x2a0] sm:$0xff]
        %v472 = vld [vmem:[%s189 + $0x2a8] sm:$0xff]
        %v473 = vld [vmem:[%s189 + $0x2b0] sm:$0xff]
        %v474 = vld [vmem:[%s189 + $0x2b8] sm:$0xff]
        %v475 = vld [vmem:[%s189 + $0x2c0] sm:$0xff]
        %v476 = vld [vmem:[%s189 + $0x2c8] sm:$0xff]
        %v477 = vld [vmem:[%s189 + $0x2d0] sm:$0xff]
        %v478 = vld [vmem:[%s189 + $0x2d8] sm:$0xff]
        %v479 = vld [vmem:[%s189 + $0x2e0] sm:$0xff]
        %v480 = vld [vmem:[%s189 + $0x2e8] sm:$0xff]
        %v481 = vld [vmem:[%s189 + $0x2f0] sm:$0xff]
        %v482 = vld [vmem:[%s189 + $0x2f8] sm:$0xff]
        %v483 = vld [vmem:[%s189 + $0x300] sm:$0xff]
        %v484 = vld [vmem:[%s189 + $0x308] sm:$0xff]
        %v485 = vld [vmem:[%s189 + $0x310] sm:$0xff]
        %v486 = vld [vmem:[%s189 + $0x318] sm:$0xff]
        %v487 = vld [vmem:[%s189 + $0x320] sm:$0xff]
        %v488 = vld [vmem:[%s189 + $0x328] sm:$0xff]
        %v489 = vld [vmem:[%s189 + $0x330] sm:$0xff]
        %v490 = vld [vmem:[%s189 + $0x338] sm:$0xff]
        %v491 = vld [vmem:[%s189 + $0x340] sm:$0xff]
        %v492 = vld [vmem:[%s189 + $0x348] sm:$0xff]
        %v493 = vld [vmem:[%s189 + $0x350] sm:$0xff]
        %v494 = vld [vmem:[%s189 + $0x358] sm:$0xff]
        %v495 = vld [vmem:[%s189 + $0x360] sm:$0xff]
        %v496 = vld [vmem:[%s189 + $0x368] sm:$0xff]
        %v497 = vld [vmem:[%s189 + $0x370] sm:$0xff]
        %v498 = vld [vmem:[%s189 + $0x378] sm:$0xff]
        %v499 = vld [vmem:[%s189 + $0x380] sm:$0xff]
        %v500 = vld [vmem:[%s189 + $0x388] sm:$0xff]
        %v501 = vld [vmem:[%s189 + $0x390] sm:$0xff]
        %v502 = vld [vmem:[%s189 + $0x398] sm:$0xff]
        %v503 = vld [vmem:[%s189 + $0x3a0] sm:$0xff]
        %v504 = vld [vmem:[%s189 + $0x3a8] sm:$0xff]
        %v505 = vld [vmem:[%s189 + $0x3b0] sm:$0xff]
        %v506 = vld [vmem:[%s189 + $0x3b8] sm:$0xff]
        %v507 = vld [vmem:[%s189 + $0x3c0] sm:$0xff]
        %v508 = vld [vmem:[%s189 + $0x3c8] sm:$0xff]
        %v509 = vld [vmem:[%s189 + $0x3d0] sm:$0xff]
        %v510 = vld [vmem:[%s189 + $0x3d8] sm:$0xff]
        %v511 = vld [vmem:[%s189 + $0x3e0] sm:$0xff]
        %v512 = vld [vmem:[%s189 + $0x3e8] sm:$0xff]
        %v513 = vld [vmem:[%s189 + $0x3f0] sm:$0xff]
        %v514 = vld [vmem:[%s189 + $0x3f8] sm:$0xff]
        %v515 = vld [vmem:[%s222] sm:$0xf]
        %v517 = vlaneseq
        %v518 = vshrl.u32 %v517, 7
        %v519 = vsub.s32 0, %v518
        %v520 = vrot.slane %v515, %v519
        %v521 = vlaneseq
        %v522 = vshrl.u32 %v521, 7
        %v523 = vsub.s32 1, %v522
        %v524 = vrot.slane %v515, %v523
        %v525 = vlaneseq
        %v526 = vshrl.u32 %v525, 7
        %v527 = vsub.s32 2, %v526
        %v528 = vrot.slane %v515, %v527
        %v529 = vlaneseq
        %v530 = vshrl.u32 %v529, 7
        %v531 = vsub.s32 3, %v530
        %v532 = vrot.slane %v515, %v531
        %537 = vmatprep.subr.mxu0 %v448
        %538 = vmatpush1.msra.mxu0 %v447
        %539 = vmatprep.subr.mxu0 %v444
        %540 = vmatpush1.msra.mxu0 %v443
        %541 = vmatprep.subr.mxu0 %v440
        %542 = vmatpush1.msra.mxu0 %v439
        %543 = vmatprep.subr.mxu0 %v436
        %544 = vmatpush1.msra.mxu0 %v435
        %545 = vmatprep.subr.mxu0 %v432
        %546 = vmatpush1.msra.mxu0 %v431
        %547 = vmatprep.subr.mxu0 %v428
        %548 = vmatpush1.msra.mxu0 %v427
        %549 = vmatprep.subr.mxu0 %v424
        %550 = vmatpush1.msra.mxu0 %v423
        %551 = vmatprep.subr.mxu0 %v420
        %552 = vmatpush1.msra.mxu0 %v419
        %553 = vmatprep.subr.mxu0 %v416
        %554 = vmatpush1.msra.mxu0 %v415
        %555 = vmatprep.subr.mxu0 %v412
        %556 = vmatpush1.msra.mxu0 %v411
        %557 = vmatprep.subr.mxu0 %v408
        %558 = vmatpush1.msra.mxu0 %v407
        %559 = vmatprep.subr.mxu0 %v404
        %560 = vmatpush1.msra.mxu0 %v403
        %561 = vmatprep.subr.mxu0 %v400
        %562 = vmatpush1.msra.mxu0 %v399
        %563 = vmatprep.subr.mxu0 %v396
        %564 = vmatpush1.msra.mxu0 %v395
        %565 = vmatprep.subr.mxu0 %v392
        %566 = vmatpush1.msra.mxu0 %v391
        %567 = vmatprep.subr.mxu0 %v388
        %568 = vmatpush1.msra.mxu0 %v387
        %569 = vmatprep.subr.mxu0 %v512
        %570 = vmatpush2.msra.mxu0 %v511
        %571 = vmatprep.subr.mxu0 %v508
        %572 = vmatpush2.msra.mxu0 %v507
        %573 = vmatprep.subr.mxu0 %v504
        %574 = vmatpush2.msra.mxu0 %v503
        %575 = vmatprep.subr.mxu0 %v500
        %576 = vmatpush2.msra.mxu0 %v499
        %577 = vmatprep.subr.mxu0 %v496
        %578 = vmatpush2.msra.mxu0 %v495
        %579 = vmatprep.subr.mxu0 %v492
        %580 = vmatpush2.msra.mxu0 %v491
        %581 = vmatprep.subr.mxu0 %v488
        %582 = vmatpush2.msra.mxu0 %v487
        %583 = vmatprep.subr.mxu0 %v484
        %584 = vmatpush2.msra.mxu0 %v483
        %585 = vmatprep.subr.mxu0 %v480
        %586 = vmatpush2.msra.mxu0 %v479
        %587 = vmatprep.subr.mxu0 %v476
        %588 = vmatpush2.msra.mxu0 %v475
        %589 = vmatprep.subr.mxu0 %v472
        %590 = vmatpush2.msra.mxu0 %v471
        %591 = vmatprep.subr.mxu0 %v468
        %592 = vmatpush2.msra.mxu0 %v467
        %593 = vmatprep.subr.mxu0 %v464
        %594 = vmatpush2.msra.mxu0 %v463
        %595 = vmatprep.subr.mxu0 %v460
        %596 = vmatpush2.msra.mxu0 %v459
        %597 = vmatprep.subr.mxu0 %v456
        %598 = vmatpush2.msra.mxu0 %v455
        %599 = vmatprep.subr.mxu0 %v452
        %600 = vmatpush2.msra.mxu0 %v451
        %601 = vmatprep.mubr.f32.mxu0 %v386
        %602 = vmatmul.mubr.f32.gmra.mxu0 %v385
        %v603 = vpop.f32.mrf.mxu0
        %v604 = vadd.f32 %v520, %v603
        %v605 = vpop.f32.mrf.mxu0
        %v606 = vadd.f32 %v524, %v605
        %607 = vdwg.mxu0
        %608 = vmatprep.subr.mxu0 %v450
        %609 = vmatpush1.msra.mxu0 %v449
        %610 = vmatprep.subr.mxu0 %v446
        %611 = vmatpush1.msra.mxu0 %v445
        %612 = vmatprep.subr.mxu0 %v442
        %613 = vmatpush1.msra.mxu0 %v441
        %614 = vmatprep.subr.mxu0 %v438
        %615 = vmatpush1.msra.mxu0 %v437
        %616 = vmatprep.subr.mxu0 %v434
        %617 = vmatpush1.msra.mxu0 %v433
        %618 = vmatprep.subr.mxu0 %v430
        %619 = vmatpush1.msra.mxu0 %v429
        %620 = vmatprep.subr.mxu0 %v426
        %621 = vmatpush1.msra.mxu0 %v425
        %622 = vmatprep.subr.mxu0 %v422
        %623 = vmatpush1.msra.mxu0 %v421
        %624 = vmatprep.subr.mxu0 %v418
        %625 = vmatpush1.msra.mxu0 %v417
        %626 = vmatprep.subr.mxu0 %v414
        %627 = vmatpush1.msra.mxu0 %v413
        %628 = vmatprep.subr.mxu0 %v410
        %629 = vmatpush1.msra.mxu0 %v409
        %630 = vmatprep.subr.mxu0 %v406
        %631 = vmatpush1.msra.mxu0 %v405
        %632 = vmatprep.subr.mxu0 %v402
        %633 = vmatpush1.msra.mxu0 %v401
        %634 = vmatprep.subr.mxu0 %v398
        %635 = vmatpush1.msra.mxu0 %v397
        %636 = vmatprep.subr.mxu0 %v394
        %637 = vmatpush1.msra.mxu0 %v393
        %638 = vmatprep.subr.mxu0 %v390
        %639 = vmatpush1.msra.mxu0 %v389
        %640 = vmatprep.subr.mxu0 %v514
        %641 = vmatpush2.msra.mxu0 %v513
        %642 = vmatprep.subr.mxu0 %v510
        %643 = vmatpush2.msra.mxu0 %v509
        %644 = vmatprep.subr.mxu0 %v506
        %645 = vmatpush2.msra.mxu0 %v505
        %646 = vmatprep.subr.mxu0 %v502
        %647 = vmatpush2.msra.mxu0 %v501
        %648 = vmatprep.subr.mxu0 %v498
        %649 = vmatpush2.msra.mxu0 %v497
        %650 = vmatprep.subr.mxu0 %v494
        %651 = vmatpush2.msra.mxu0 %v493
        %652 = vmatprep.subr.mxu0 %v490
        %653 = vmatpush2.msra.mxu0 %v489
        %654 = vmatprep.subr.mxu0 %v486
        %655 = vmatpush2.msra.mxu0 %v485
        %656 = vmatprep.subr.mxu0 %v482
        %657 = vmatpush2.msra.mxu0 %v481
        %658 = vmatprep.subr.mxu0 %v478
        %659 = vmatpush2.msra.mxu0 %v477
        %660 = vmatprep.subr.mxu0 %v474
        %661 = vmatpush2.msra.mxu0 %v473
        %662 = vmatprep.subr.mxu0 %v470
        %663 = vmatpush2.msra.mxu0 %v469
        %664 = vmatprep.subr.mxu0 %v466
        %665 = vmatpush2.msra.mxu0 %v465
        %666 = vmatprep.subr.mxu0 %v462
        %667 = vmatpush2.msra.mxu0 %v461
        %668 = vmatprep.subr.mxu0 %v458
        %669 = vmatpush2.msra.mxu0 %v457
        %670 = vmatprep.subr.mxu0 %v454
        %671 = vmatpush2.msra.mxu0 %v453
        %672 = vmatprep.mubr.f32.mxu0 %v386
        %673 = vmatmul.mubr.f32.gmra.mxu0 %v385
        %v674 = vpop.f32.mrf.mxu0
        %v675 = vadd.f32 %v528, %v674
        %v676 = vpop.f32.mrf.mxu0
        %v677 = vadd.f32 %v532, %v676
        %678 = vdwg.mxu0
        %v679 = vxor.u32 %v604, 2147483648
        %v680 = vmul.f32 %v679, 1.442695
        %v681 = vpow.pop %v680
        %v682 = vadd.f32 %v681, 1.0
        %v683 = vrcp.pop %v682
        %v684 = vmul.f32 1.0, %v683
        %v685 = vxor.u32 %v606, 2147483648
        %v686 = vmul.f32 %v685, 1.442695
        %v687 = vpow.pop %v686
        %v688 = vadd.f32 %v687, 1.0
        %v689 = vrcp.pop %v688
        %v690 = vmul.f32 1.0, %v689
        %v691 = vmul.f32 %v684, %v677
        %v692 = vadd.f32 %v675, %v691
        %v693 = vtanh.pop %v692
        %v694 = vsub.f32 1.0, %v690
        %v695 = vmul.f32 %v694, %v693
        %v696 = vmul.f32 %v690, %v386
        %v697 = vadd.f32 %v695, %v696
        %698 = vst [vmem:[%s230] sm:$0xff] %v697
        %699 = vst [vmem:[#allocation2] sm:$0xff] %v697
        %p700 = scmp.lt.s32.totalorder %s25, 1
        %s701 = scalar_select %p700, %s25, 1
        %s702 = smul.addr %s701, 8
        %s703 = scalar_lea.vmem %s5, %s702
        // Predicated region
        $region73: #{encoder_rnn_forward.1} parent=31 // pred_check
          %p704 = pneg %p121
        $region74: #{encoder_rnn_forward.1} parent=31 // pred_check_branch
          %706 = sbr.rel (%p704) target = $region76
        $region75: #{encoder_rnn_forward.1} parent=31 // pred_region
          _
        $region76: #{encoder_rnn_forward.1} parent=31 // pred_fallthru
          _
      $region32: #{encoder_rnn_forward.1} parent=5 // pred_fallthru
        _
      %p707 = scmp.le.s32.totalorder 2, %s20
      // Predicated region
      $region77: #{encoder_rnn_forward.1} parent=5 // pred_check
        %p708 = pneg %p707
      $region78: #{encoder_rnn_forward.1} parent=5 // pred_check_branch
        %710 = sbr.rel (%p708) target = $region80
      $region79: #{encoder_rnn_forward.1} parent=5 // pred_region
        %s711 = ssub.s32 %s20, 2
        // Predicated region
        $region81: #{encoder_rnn_forward.1} parent=79 // pred_check
          %p712 = pneg %p127
        $region82: #{encoder_rnn_forward.1} parent=79 // pred_check_branch
          %714 = sbr.rel (%p712) target = $region84
        $region83: #{encoder_rnn_forward.1} parent=79 // pred_region
          %p715 = scmp.lt.s32.totalorder %s26, 1
          %s716 = scalar_select %p715, %s26, 1
          %s717 = smul.addr %s716, 8
          %s718 = scalar_lea.vmem %s5, %s717
        $region84: #{encoder_rnn_forward.1} parent=79 // pred_fallthru
          _
      $region80: #{encoder_rnn_forward.1} parent=5 // pred_fallthru
        _
    $region6: #{encoder_rnn_forward.1} parent=1 // loop_footer
      %s24 = sadd.s32 1, %s20
    $region7: #{encoder_rnn_forward.1} parent=1 // loop_footer_branch
      %19 = sbr.rel target = $region3
    $region8: #{encoder_rnn_forward.1} parent=1 // loop_exit
      _
    %719 = vsyncpa [#allocation7], 1
    %s720 = scalar_lea.sflag [#allocation7], 1
    %721 = vsyncpa %s720, 1
  %722 = vsyncmov [#allocation3]
  %s723 = vpop.sfrf %722
  %p724 = scmp.eq.s32.totalorder %s723, 0
  %p725 = pneg %p724
  %727 = shalt.err (%p725)
  %s728 = scalar_lea.sflag [#allocation3], 1
  %729 = vsyncmov %s728
  %s730 = vpop.sfrf %729
  %p731 = scmp.eq.s32.totalorder %s730, 0
  %p732 = pneg %p731
  %734 = shalt.err (%p732)
  %s735 = scalar_lea.sflag [#allocation3], 2
  %736 = vsyncmov %s735
  %s737 = vpop.sfrf %736
  %p738 = scmp.eq.s32.totalorder %s737, 0
  %p739 = pneg %p738
  %741 = shalt.err (%p739)
  %s742 = scalar_lea.sflag [#allocation3], 3
  %743 = vsyncmov %s742
  %s744 = vpop.sfrf %743
  %p745 = scmp.eq.s32.totalorder %s744, 0
  %p746 = pneg %p745
  %748 = shalt.err (%p746)
  %s749 = scalar_lea.sflag [#allocation3], 4
  %750 = vsyncmov %s749
  %s751 = vpop.sfrf %750
  %p752 = scmp.eq.s32.totalorder %s751, 0
  %p753 = pneg %p752
  %755 = shalt.err (%p753)
  %s756 = scalar_lea.sflag [#allocation3], 5
  %757 = vsyncmov %s756
  %s758 = vpop.sfrf %757
  %p759 = scmp.eq.s32.totalorder %s758, 0
  %p760 = pneg %p759
  %762 = shalt.err (%p760)
  %s763 = scalar_lea.sflag [#allocation3], 6
  %764 = vsyncmov %s763
  %s765 = vpop.sfrf %764
  %p766 = scmp.eq.s32.totalorder %s765, 0
  %p767 = pneg %p766
  %769 = shalt.err (%p767)
  %s770 = scalar_lea.sflag [#allocation3], 7
  %771 = vsyncmov %s770
  %s772 = vpop.sfrf %771
  %p773 = scmp.eq.s32.totalorder %s772, 0
  %p774 = pneg %p773
  %776 = shalt.err (%p774)

</llo_original>
